<compile_context>
chip_gen: v7x
topology: tpu7x:2x2x1
jax: 0.10.0
libtpu: 0.0.40
codegen_flags: <defaults>
</compile_context>

<pallas_src>
import functools

import jax
import jax.numpy as jnp
from jax.experimental import pallas as pl
from jax.experimental.pallas import tpu as pltpu


_SQRT_HALF = 0.7071067811865476


def _gelu_erf(x):
    """torch.nn.GELU() (approximate='none'): 0.5*x*(1+erf(x/sqrt(2))).

    erf via Abramowitz & Stegun 7.1.26 (|abs err| <= 1.5e-7).  The divide is an
    EUP approximate reciprocal so the VALU only sees mul/adds on the (T, I) tensor.
    """
    z = x * _SQRT_HALF
    a1, a2, a3, a4, a5 = (0.254829592, -0.284496736, 1.421413741,
                          -1.453152027, 1.061405429)
    p = 0.3275911
    az = jnp.abs(z)
    t = pl.reciprocal(1.0 + p * az, approx=True)
    poly = ((((a5 * t + a4) * t + a3) * t + a2) * t + a1) * t
    erf = 1.0 - poly * jnp.exp(-az * az)
    erf = jnp.where(z >= 0, erf, -erf)
    return 0.5 * x * (1.0 + erf)


def _convnext_kernel(x_cur_ref, x_prv_ref, x_nxt_ref,
                     dw_w_ref, dw_b_ref, ln_w_ref, ln_b_ref,
                     w1_ref, b1_ref, grn_g_ref, grn_b_ref, w2_ref, b2_ref,
                     o_ref, sumsq_ref, win_ref,
                     *, tile_t, dilation, eps):
    f32 = jnp.float32
    phase = pl.program_id(1)          # 0: GRN stats sweep, 1: apply + project sweep
    t = pl.program_id(2)              # T-tile index
    n_t = pl.num_programs(2)
    pad = 3 * dilation

    # ---- halo'd depthwise-conv window in VMEM scratch ('same' zero padding) ----
    # Window row s corresponds to global time (t*tile_t - pad + s).
    if tile_t >= pad:
        lmask = (t > 0).astype(f32)            # sequence start -> zero left halo
        rmask = (t < n_t - 1).astype(f32)      # sequence end   -> zero right halo
        win_ref[0:pad, :] = x_prv_ref[0, tile_t - pad:tile_t, :].astype(f32) * lmask
        win_ref[pad + tile_t:, :] = x_nxt_ref[0, 0:pad, :].astype(f32) * rmask
    else:
        # Single-tile sequence shorter than the halo: halo is entirely zero padding.
        zeros = jnp.zeros((pad, win_ref.shape[-1]), f32)
        win_ref[0:pad, :] = zeros
        win_ref[pad + tile_t:, :] = zeros
    win_ref[pad:pad + tile_t, :] = x_cur_ref[0].astype(f32)

    # ---- depthwise Conv1d(k=7): 7 shifted multiply-adds, taps read from the ref ----
    dw_w = dw_w_ref[...].astype(f32)           # (7, dim); dw_w[k, c] = conv.weight[c, 0, k]
    conv = win_ref[0:tile_t, :] * dw_w[0:1, :]
    for k in range(1, 7):
        conv = conv + win_ref[k * dilation:k * dilation + tile_t, :] * dw_w[k:k + 1, :]
    conv = conv + dw_b_ref[...].astype(f32)

    # ---- LayerNorm over channels (lanes), centered two-pass variance ----
    mean = jnp.mean(conv, axis=-1, keepdims=True)
    cent = conv - mean
    var = jnp.mean(cent * cent, axis=-1, keepdims=True)
    xhat = cent * jax.lax.rsqrt(var + eps)
    xhat = xhat * ln_w_ref[...].astype(f32) + ln_b_ref[...].astype(f32)

    # ---- pwconv1 (bf16 MXU, f32 accumulate) + exact GELU ----
    h = jnp.dot(xhat.astype(jnp.bfloat16), w1_ref[...],
                preferred_element_type=f32) + b1_ref[...].astype(f32)
    a = _gelu_erf(h)                           # (tile_t, inter) f32

    # ---- phase 0: accumulate GRN statistics (sum over time of a^2, per channel) ----
    @pl.when(phase == 0)
    def _accumulate_grn_stats():
        @pl.when(t == 0)
        def _init():
            sumsq_ref[...] = jnp.zeros_like(sumsq_ref)
        sumsq_ref[...] += jnp.sum(a * a, axis=0, keepdims=True)

    # ---- phase 1: GRN + pwconv2 + residual ----
    @pl.when(phase == 1)
    def _apply_and_project():
        gx = jnp.sqrt(sumsq_ref[...])                                    # (1, inter)
        nx = gx / (jnp.mean(gx, axis=-1, keepdims=True) + 1e-6)          # (1, inter)
        # gamma*(a*nx) + beta + a  ==  a*(gamma*nx + 1) + beta
        scale = grn_g_ref[...].astype(f32) * nx + 1.0
        g = a * scale + grn_b_ref[...].astype(f32)
        out = jnp.dot(g.astype(jnp.bfloat16), w2_ref[...],
                      preferred_element_type=f32) + b2_ref[...].astype(f32)
        # Re-read the residual from the ref right before the store (small live range).
        o_ref[0] = (x_cur_ref[0].astype(f32) + out).astype(o_ref.dtype)


def _vmem_limit_bytes():
    """Per-chip VMEM budget: capacity minus headroom (never the whole VMEM)."""
    try:
        cap = int(pltpu.get_tpu_info().vmem_capacity_bytes)
    except Exception:
        cap = 128 * 1024 * 1024
    return max(32 * 1024 * 1024, min(cap - 16 * 1024 * 1024, 100 * 1024 * 1024))


def _choose_tile_t(T, pad, tile_t=None, target=256):
    if tile_t is None:
        if T <= target:
            tile_t = T
        else:
            tile_t = T
            for cand in range(min(target, T), 7, -1):
                if T % cand == 0 and cand % 8 == 0 and cand >= pad:
                    tile_t = cand
                    break
    if T % tile_t != 0:
        raise ValueError(f"T={T} must be divisible by tile_t={tile_t}")
    n_t = T // tile_t
    if n_t > 1 and pad > tile_t:
        raise ValueError("halo (3*dilation) must fit inside one neighbouring tile")
    return tile_t


def convnext_v2_block_channels_last(xt, params, *, dilation=1, eps=1e-6, tile_t=None):
    """Primary entry point.  xt: (B, T, dim) channels-last -> (B, T, dim)."""
    B, T, dim = xt.shape
    inter = params["w1"].shape[1]
    pad = 3 * dilation
    tile_T = _choose_tile_t(T, pad, tile_t)
    n_t = T // tile_T

    # Ship the MXU weights as bf16 (f32 accumulation happens in the kernel).
    w1 = params["w1"].astype(jnp.bfloat16)
    w2 = params["w2"].astype(jnp.bfloat16)

    kernel = functools.partial(_convnext_kernel, tile_t=tile_T, dilation=dilation, eps=eps)

    cur_map = lambda b, p, t: (b, t, 0)
    prv_map = lambda b, p, t: (b, jnp.maximum(t - 1, 0), 0)
    nxt_map = lambda b, p, t, _n=n_t: (b, jnp.minimum(t + 1, _n - 1), 0)
    # During the stats phase keep the output block index constant so no garbage tile
    # is ever written back; phase 1 walks the tiles and writes the real output.
    out_map = lambda b, p, t: (b, jnp.where(p == 1, t, 0), 0)
    cmap = lambda b, p, t: (0, 0)

    out = pl.pallas_call(
        kernel,
        out_shape=jax.ShapeDtypeStruct((B, T, dim), xt.dtype),
        grid=(B, 2, n_t),
        in_specs=[
            pl.BlockSpec((1, tile_T, dim), cur_map),   # current T-tile
            pl.BlockSpec((1, tile_T, dim), prv_map),   # previous tile (left halo)
            pl.BlockSpec((1, tile_T, dim), nxt_map),   # next tile (right halo)
            pl.BlockSpec((7, dim), cmap),              # dwconv weight
            pl.BlockSpec((1, dim), cmap),              # dwconv bias
            pl.BlockSpec((1, dim), cmap),              # LN weight
            pl.BlockSpec((1, dim), cmap),              # LN bias
            pl.BlockSpec((dim, inter), cmap),          # pwconv1 weight (bf16)
            pl.BlockSpec((1, inter), cmap),            # pwconv1 bias
            pl.BlockSpec((1, inter), cmap),            # GRN gamma
            pl.BlockSpec((1, inter), cmap),            # GRN beta
            pl.BlockSpec((inter, dim), cmap),          # pwconv2 weight (bf16)
            pl.BlockSpec((1, dim), cmap),              # pwconv2 bias
        ],
        out_specs=pl.BlockSpec((1, tile_T, dim), out_map),
        scratch_shapes=[
            pltpu.VMEM((1, inter), jnp.float32),                  # GRN sum(a^2) accumulator
            pltpu.VMEM((tile_T + 2 * pad, dim), jnp.float32),     # halo'd dwconv window
        ],
        compiler_params=pltpu.CompilerParams(
            dimension_semantics=("parallel", "arbitrary", "arbitrary"),
            vmem_limit_bytes=_vmem_limit_bytes(),
        ),
    )(
        xt, xt, xt,
        params["dw_w"], params["dw_b"],
        params["ln_w"], params["ln_b"],
        w1, params["b1"],
        params["gamma"], params["beta"],
        w2, params["b2"],
    )
    return out


def convnext_v2_block(x, params, *, dilation=1, eps=1e-6, tile_t=None):
    """Drop-in torch layout: x (B, dim, T) -> (B, dim, T).

    The two transposes below are pure layout plumbing for parity with the PyTorch
    module; keep the surrounding model channels-last and call
    convnext_v2_block_channels_last directly to remove both HBM passes.
    """
    xt = jnp.transpose(x, (0, 2, 1))                                   # (B, T, dim)
    out = convnext_v2_block_channels_last(xt, params, dilation=dilation,
                                          eps=eps, tile_t=tile_t)
    return jnp.transpose(out, (0, 2, 1))


def _reference(x, p, *, dilation=1, eps=1e-6):
    """Pure-JAX reference mirroring the PyTorch forward (groups=1, no adanorm)."""
    B, dim, T = x.shape
    pad = 3 * dilation
    hi = jax.lax.Precision.HIGHEST
    xt = jnp.transpose(x, (0, 2, 1)).astype(jnp.float32)               # (B, T, dim)
    xp = jnp.pad(xt, ((0, 0), (pad, pad), (0, 0)))
    conv = jnp.zeros_like(xt)
    for k in range(7):
        conv = conv + xp[:, k * dilation:k * dilation + T, :] * p["dw_w"][k][None, None, :]
    conv = conv + p["dw_b"]
    mean = jnp.mean(conv, axis=-1, keepdims=True)
    var = jnp.mean(jnp.square(conv - mean), axis=-1, keepdims=True)    # biased, like torch
    xn = (conv - mean) * jax.lax.rsqrt(var + eps)
    xn = xn * p["ln_w"] + p["ln_b"]
    h = jnp.einsum("btd,dk->btk", xn, p["w1"], precision=hi) + p["b1"]
    a = jax.nn.gelu(h, approximate=False)
    gx = jnp.sqrt(jnp.sum(jnp.square(a), axis=1, keepdims=True))       # (B, 1, I)
    nx = gx / (jnp.mean(gx, axis=-1, keepdims=True) + 1e-6)
    g = p["gamma"] * (a * nx) + p["beta"] + a
    out = jnp.einsum("btk,kd->btd", g, p["w2"], precision=hi) + p["b2"]
    y = xt + out
    return jnp.transpose(y, (0, 2, 1)).astype(x.dtype)


if __name__ == "__main__":
    # Small but lane-friendly shapes; T chosen so the T-tiling (nT=4) and both the
    # edge and interior halo paths are exercised.  B is even so a v7x megacore gets
    # both TensorCores busy on the "parallel" batch axis.
    B, DIM, INTER, T = 2, 128, 256, 256
    dilation = 1
    tile_t = 64

    key = jax.random.PRNGKey(0)
    ks = jax.random.split(key, 11)
    x = jax.random.normal(ks[0], (B, DIM, T), dtype=jnp.float32)

    # Deterministic "trained" parameters in kernel-friendly layouts.
    # Mapping from a torch checkpoint would be:
    #   dw_w = dwconv.weight[:, 0, :].T ; w1 = pwconv1.weight.T ; w2 = pwconv2.weight.T
    #   gamma/beta = grn.gamma[0]/grn.beta[0] ; biases reshaped to (1, C).
    params = {
        "dw_w": 0.2 * jax.random.normal(ks[1], (7, DIM), dtype=jnp.float32),
        "dw_b": 0.1 * jax.random.normal(ks[2], (1, DIM), dtype=jnp.float32),
        "ln_w": 1.0 + 0.1 * jax.random.normal(ks[3], (1, DIM), dtype=jnp.float32),
        "ln_b": 0.05 * jax.random.normal(ks[4], (1, DIM), dtype=jnp.float32),
        "w1": jax.random.normal(ks[5], (DIM, INTER), dtype=jnp.float32) / (DIM ** 0.5),
        "b1": 0.05 * jax.random.normal(ks[6], (1, INTER), dtype=jnp.float32),
        "gamma": 0.5 + 0.1 * jax.random.normal(ks[7], (1, INTER), dtype=jnp.float32),
        "beta": 0.05 * jax.random.normal(ks[8], (1, INTER), dtype=jnp.float32),
        "w2": jax.random.normal(ks[9], (INTER, DIM), dtype=jnp.float32) / (INTER ** 0.5),
        "b2": 0.02 * jax.random.normal(ks[10], (1, DIM), dtype=jnp.float32),
    }

    y = convnext_v2_block(x, params, dilation=dilation, eps=1e-6, tile_t=tile_t)
    y = jax.block_until_ready(y)

    y_ref = _reference(x, params, dilation=dilation, eps=1e-6)
    assert y.shape == x.shape

    err = float(jnp.max(jnp.abs(y - y_ref)))
    scale = float(jnp.max(jnp.abs(y_ref)))
    # Tolerance absorbs bf16 MXU operands (f32 accumulate) + approximate erf/reciprocal,
    # while still catching real math errors (wrong norm / missing op -> O(1) deviation).
    assert err <= 2e-2 * max(scale, 1.0), (err, scale)

    print("KERNEL_OK")
</pallas_src>

<mosaic_0001>
module attributes {stable_mosaic.version = 11 : i64} {
  func.func @_convnext_kernel(%arg0: i32, %arg1: i32, %arg2: i32, %arg3: memref<1x64x128xf32, #tpu.memory_space<vmem>>, %arg4: memref<1x64x128xf32, #tpu.memory_space<vmem>>, %arg5: memref<1x64x128xf32, #tpu.memory_space<vmem>>, %arg6: memref<7x128xf32, #tpu.memory_space<vmem>>, %arg7: memref<1x128xf32, #tpu.memory_space<vmem>>, %arg8: memref<1x128xf32, #tpu.memory_space<vmem>>, %arg9: memref<1x128xf32, #tpu.memory_space<vmem>>, %arg10: memref<128x256xbf16, #tpu.memory_space<vmem>>, %arg11: memref<1x256xf32, #tpu.memory_space<vmem>>, %arg12: memref<1x256xf32, #tpu.memory_space<vmem>>, %arg13: memref<1x256xf32, #tpu.memory_space<vmem>>, %arg14: memref<256x128xbf16, #tpu.memory_space<vmem>>, %arg15: memref<1x128xf32, #tpu.memory_space<vmem>>, %arg16: memref<1x64x128xf32, #tpu.memory_space<vmem>>, %arg17: memref<1x256xf32, #tpu.memory_space<vmem>>, %arg18: memref<70x128xf32, #tpu.memory_space<vmem>>) attributes {dimension_semantics = [#tpu.dimension_semantics<parallel>, #tpu.dimension_semantics<arbitrary>, #tpu.dimension_semantics<arbitrary>], iteration_bounds = array<i64: 2, 2, 4>, scalar_prefetch = 0 : i64, scratch_operands = 2 : i64, tpu.core_type = #tpu.core_type<tc>, window_params = [{transform_indices = @transform_0, window_bounds = array<i64: 1, 64, 128>}, {transform_indices = @transform_1, window_bounds = array<i64: 1, 64, 128>}, {transform_indices = @transform_2, window_bounds = array<i64: 1, 64, 128>}, {pipeline_mode = #tpu.pipeline_mode<synchronous>, transform_indices = @transform_3, window_bounds = array<i64: 7, 128>}, {pipeline_mode = #tpu.pipeline_mode<synchronous>, transform_indices = @transform_4, window_bounds = array<i64: 1, 128>}, {pipeline_mode = #tpu.pipeline_mode<synchronous>, transform_indices = @transform_5, window_bounds = array<i64: 1, 128>}, {pipeline_mode = #tpu.pipeline_mode<synchronous>, transform_indices = @transform_6, window_bounds = array<i64: 1, 128>}, {pipeline_mode = #tpu.pipeline_mode<synchronous>, transform_indices = @transform_7, window_bounds = array<i64: 128, 256>}, {pipeline_mode = #tpu.pipeline_mode<synchronous>, transform_indices = @transform_8, window_bounds = array<i64: 1, 256>}, {pipeline_mode = #tpu.pipeline_mode<synchronous>, transform_indices = @transform_9, window_bounds = array<i64: 1, 256>}, {pipeline_mode = #tpu.pipeline_mode<synchronous>, transform_indices = @transform_10, window_bounds = array<i64: 1, 256>}, {pipeline_mode = #tpu.pipeline_mode<synchronous>, transform_indices = @transform_11, window_bounds = array<i64: 256, 128>}, {pipeline_mode = #tpu.pipeline_mode<synchronous>, transform_indices = @transform_12, window_bounds = array<i64: 1, 128>}, {transform_indices = @transform_13, window_bounds = array<i64: 1, 64, 128>}]} {
    %c0_i32 = arith.constant 0 : i32
    %0 = arith.cmpi sgt, %arg2, %c0_i32 : i32
    %1 = arith.extui %0 : i1 to i32
    %2 = arith.sitofp %1 : i32 to f32
    %c3_i32 = arith.constant 3 : i32
    %3 = arith.cmpi slt, %arg2, %c3_i32 : i32
    %4 = arith.extui %3 : i1 to i32
    %5 = arith.sitofp %4 : i32 to f32
    %c0 = arith.constant 0 : index
    %c61 = arith.constant 61 : index
    %c0_0 = arith.constant 0 : index
    %6 = vector.load %arg4[%c0, %c61, %c0_0] : memref<1x64x128xf32, #tpu.memory_space<vmem>>, vector<1x3x128xf32>
    %7 = vector.shape_cast %6 : vector<1x3x128xf32> to vector<3x128xf32>
    %8 = vector.broadcast %2 : f32 to vector<3x128xf32>
    %9 = arith.mulf %7, %8 : vector<3x128xf32>
    %c0_1 = arith.constant 0 : index
    %c0_2 = arith.constant 0 : index
    %10 = vector.load %arg18[%c0_1, %c0_2] : memref<70x128xf32, #tpu.memory_space<vmem>>, vector<3x128xf32>
    tpu.vector_store %arg18[%c0_1, %c0_2], %9 {strides = array<i32>} : memref<70x128xf32, #tpu.memory_space<vmem>>, vector<3x128xf32>,
    %c0_3 = arith.constant 0 : index
    %c0_4 = arith.constant 0 : index
    %c0_5 = arith.constant 0 : index
    %11 = vector.load %arg5[%c0_3, %c0_4, %c0_5] : memref<1x64x128xf32, #tpu.memory_space<vmem>>, vector<1x3x128xf32>
    %12 = vector.shape_cast %11 : vector<1x3x128xf32> to vector<3x128xf32>
    %13 = vector.broadcast %5 : f32 to vector<3x128xf32>
    %14 = arith.mulf %12, %13 : vector<3x128xf32>
    %c67 = arith.constant 67 : index
    %c0_6 = arith.constant 0 : index
    %15 = vector.load %arg18[%c67, %c0_6] : memref<70x128xf32, #tpu.memory_space<vmem>>, vector<3x128xf32>
    tpu.vector_store %arg18[%c67, %c0_6], %14 {strides = array<i32>} : memref<70x128xf32, #tpu.memory_space<vmem>>, vector<3x128xf32>,
    %c0_7 = arith.constant 0 : index
    %c0_8 = arith.constant 0 : index
    %c0_9 = arith.constant 0 : index
    %16 = vector.load %arg3[%c0_7, %c0_8, %c0_9] : memref<1x64x128xf32, #tpu.memory_space<vmem>>, vector<1x64x128xf32>
    %17 = vector.shape_cast %16 : vector<1x64x128xf32> to vector<64x128xf32>
    %c3 = arith.constant 3 : index
    %c0_10 = arith.constant 0 : index
    %18 = vector.load %arg18[%c3, %c0_10] : memref<70x128xf32, #tpu.memory_space<vmem>>, vector<64x128xf32>
    tpu.vector_store %arg18[%c3, %c0_10], %17 {strides = array<i32>} : memref<70x128xf32, #tpu.memory_space<vmem>>, vector<64x128xf32>,
    %c0_11 = arith.constant 0 : index
    %c0_12 = arith.constant 0 : index
    %19 = vector.load %arg6[%c0_11, %c0_12] : memref<7x128xf32, #tpu.memory_space<vmem>>, vector<7x128xf32>
    %c0_13 = arith.constant 0 : index
    %c0_14 = arith.constant 0 : index
    %20 = vector.load %arg18[%c0_13, %c0_14] : memref<70x128xf32, #tpu.memory_space<vmem>>, vector<64x128xf32>
    %21 = vector.extract_strided_slice %19 {offsets = [0, 0], sizes = [1, 128], strides = [1, 1]} : vector<7x128xf32> to vector<1x128xf32>
    %22 = vector.broadcast %21 : vector<1x128xf32> to vector<64x128xf32>
    %23 = arith.mulf %20, %22 : vector<64x128xf32>
    %c1 = arith.constant 1 : index
    %c0_15 = arith.constant 0 : index
    %24 = vector.load %arg18[%c1, %c0_15] : memref<70x128xf32, #tpu.memory_space<vmem>>, vector<64x128xf32>
    %25 = vector.extract_strided_slice %19 {offsets = [1, 0], sizes = [1, 128], strides = [1, 1]} : vector<7x128xf32> to vector<1x128xf32>
    %26 = vector.broadcast %25 : vector<1x128xf32> to vector<64x128xf32>
    %27 = arith.mulf %24, %26 : vector<64x128xf32>
    %28 = arith.addf %23, %27 : vector<64x128xf32>
    %c2 = arith.constant 2 : index
    %c0_16 = arith.constant 0 : index
    %29 = vector.load %arg18[%c2, %c0_16] : memref<70x128xf32, #tpu.memory_space<vmem>>, vector<64x128xf32>
    %30 = vector.extract_strided_slice %19 {offsets = [2, 0], sizes = [1, 128], strides = [1, 1]} : vector<7x128xf32> to vector<1x128xf32>
    %31 = vector.broadcast %30 : vector<1x128xf32> to vector<64x128xf32>
    %32 = arith.mulf %29, %31 : vector<64x128xf32>
    %33 = arith.addf %28, %32 : vector<64x128xf32>
    %c3_17 = arith.constant 3 : index
    %c0_18 = arith.constant 0 : index
    %34 = vector.load %arg18[%c3_17, %c0_18] : memref<70x128xf32, #tpu.memory_space<vmem>>, vector<64x128xf32>
    %35 = vector.extract_strided_slice %19 {offsets = [3, 0], sizes = [1, 128], strides = [1, 1]} : vector<7x128xf32> to vector<1x128xf32>
    %36 = vector.broadcast %35 : vector<1x128xf32> to vector<64x128xf32>
    %37 = arith.mulf %34, %36 : vector<64x128xf32>
    %38 = arith.addf %33, %37 : vector<64x128xf32>
    %c4 = arith.constant 4 : index
    %c0_19 = arith.constant 0 : index
    %39 = vector.load %arg18[%c4, %c0_19] : memref<70x128xf32, #tpu.memory_space<vmem>>, vector<64x128xf32>
    %40 = vector.extract_strided_slice %19 {offsets = [4, 0], sizes = [1, 128], strides = [1, 1]} : vector<7x128xf32> to vector<1x128xf32>
    %41 = vector.broadcast %40 : vector<1x128xf32> to vector<64x128xf32>
    %42 = arith.mulf %39, %41 : vector<64x128xf32>
    %43 = arith.addf %38, %42 : vector<64x128xf32>
    %c5 = arith.constant 5 : index
    %c0_20 = arith.constant 0 : index
    %44 = vector.load %arg18[%c5, %c0_20] : memref<70x128xf32, #tpu.memory_space<vmem>>, vector<64x128xf32>
    %45 = vector.extract_strided_slice %19 {offsets = [5, 0], sizes = [1, 128], strides = [1, 1]} : vector<7x128xf32> to vector<1x128xf32>
    %46 = vector.broadcast %45 : vector<1x128xf32> to vector<64x128xf32>
    %47 = arith.mulf %44, %46 : vector<64x128xf32>
    %48 = arith.addf %43, %47 : vector<64x128xf32>
    %c6 = arith.constant 6 : index
    %c0_21 = arith.constant 0 : index
    %49 = vector.load %arg18[%c6, %c0_21] : memref<70x128xf32, #tpu.memory_space<vmem>>, vector<64x128xf32>
    %50 = vector.extract_strided_slice %19 {offsets = [6, 0], sizes = [1, 128], strides = [1, 1]} : vector<7x128xf32> to vector<1x128xf32>
    %51 = vector.broadcast %50 : vector<1x128xf32> to vector<64x128xf32>
    %52 = arith.mulf %49, %51 : vector<64x128xf32>
    %53 = arith.addf %48, %52 : vector<64x128xf32>
    %c0_22 = arith.constant 0 : index
    %c0_23 = arith.constant 0 : index
    %54 = vector.load %arg7[%c0_22, %c0_23] : memref<1x128xf32, #tpu.memory_space<vmem>>, vector<1x128xf32>
    %55 = vector.broadcast %54 : vector<1x128xf32> to vector<64x128xf32>
    %56 = arith.addf %53, %55 : vector<64x128xf32>
    %cst = arith.constant dense<0.000000e+00> : vector<64xf32>
    %57 = vector.multi_reduction <add>, %56, %cst [1] : vector<64x128xf32> to vector<64xf32>
    %58 = vector.shape_cast %57 : vector<64xf32> to vector<64x1xf32>
    %cst_24 = arith.constant 1.280000e+02 : f32
    %59 = vector.broadcast %cst_24 : f32 to vector<64x1xf32>
    %60 = arith.divf %58, %59 : vector<64x1xf32>
    %61 = vector.broadcast %60 : vector<64x1xf32> to vector<64x128xf32>
    %62 = arith.subf %56, %61 : vector<64x128xf32>
    %63 = arith.mulf %62, %62 : vector<64x128xf32>
    %cst_25 = arith.constant dense<0.000000e+00> : vector<64xf32>
    %64 = vector.multi_reduction <add>, %63, %cst_25 [1] : vector<64x128xf32> to vector<64xf32>
    %65 = vector.shape_cast %64 : vector<64xf32> to vector<64x1xf32>
    %cst_26 = arith.constant 1.280000e+02 : f32
    %66 = vector.broadcast %cst_26 : f32 to vector<64x1xf32>
    %67 = arith.divf %65, %66 : vector<64x1xf32>
    %cst_27 = arith.constant 9.99999997E-7 : f32
    %68 = vector.broadcast %cst_27 : f32 to vector<64x1xf32>
    %69 = arith.addf %67, %68 : vector<64x1xf32>
    %70 = math.rsqrt %69 : vector<64x1xf32>
    %71 = vector.broadcast %70 : vector<64x1xf32> to vector<64x128xf32>
    %72 = arith.mulf %62, %71 : vector<64x128xf32>
    %c0_28 = arith.constant 0 : index
    %c0_29 = arith.constant 0 : index
    %73 = vector.load %arg8[%c0_28, %c0_29] : memref<1x128xf32, #tpu.memory_space<vmem>>, vector<1x128xf32>
    %74 = vector.broadcast %73 : vector<1x128xf32> to vector<64x128xf32>
    %75 = arith.mulf %72, %74 : vector<64x128xf32>
    %c0_30 = arith.constant 0 : index
    %c0_31 = arith.constant 0 : index
    %76 = vector.load %arg9[%c0_30, %c0_31] : memref<1x128xf32, #tpu.memory_space<vmem>>, vector<1x128xf32>
    %77 = vector.broadcast %76 : vector<1x128xf32> to vector<64x128xf32>
    %78 = arith.addf %75, %77 : vector<64x128xf32>
    %79 = arith.truncf %78 : vector<64x128xf32> to vector<64x128xbf16>
    %c0_32 = arith.constant 0 : index
    %c0_33 = arith.constant 0 : index
    %80 = vector.load %arg10[%c0_32, %c0_33] : memref<128x256xbf16, #tpu.memory_space<vmem>>, vector<128x256xbf16>
    %cst_34 = arith.constant dense<0.000000e+00> : vector<64x256xf32>
    %81 = tpu.matmul %79, %80, %cst_34 {dimension_numbers = #tpu.dot_dimension_numbers<[1], [0], [0], [1], [0, 0, 1, 1], [], []>} : vector<64x128xbf16>, vector<128x256xbf16>, vector<64x256xf32> -> vector<64x256xf32>
    %c0_35 = arith.constant 0 : index
    %c0_36 = arith.constant 0 : index
    %82 = vector.load %arg11[%c0_35, %c0_36] : memref<1x256xf32, #tpu.memory_space<vmem>>, vector<1x256xf32>
    %83 = vector.broadcast %82 : vector<1x256xf32> to vector<64x256xf32>
    %84 = arith.addf %81, %83 : vector<64x256xf32>
    %cst_37 = arith.constant 0.707106769 : f32
    %85 = vector.broadcast %cst_37 : f32 to vector<64x256xf32>
    %86 = arith.mulf %84, %85 : vector<64x256xf32>
    %87 = math.absf %86 : vector<64x256xf32>
    %cst_38 = arith.constant 0.327591091 : f32
    %88 = vector.broadcast %cst_38 : f32 to vector<64x256xf32>
    %89 = arith.mulf %88, %87 : vector<64x256xf32>
    %cst_39 = arith.constant 1.000000e+00 : f32
    %90 = vector.broadcast %cst_39 : f32 to vector<64x256xf32>
    %91 = arith.addf %90, %89 : vector<64x256xf32>
    %92 = tpu.reciprocal %91 {approx = true} : vector<64x256xf32> -> vector<64x256xf32>
    %cst_40 = arith.constant 1.06140542 : f32
    %93 = vector.broadcast %cst_40 : f32 to vector<64x256xf32>
    %94 = arith.mulf %93, %92 : vector<64x256xf32>
    %cst_41 = arith.constant -1.45315206 : f32
    %95 = vector.broadcast %cst_41 : f32 to vector<64x256xf32>
    %96 = arith.addf %94, %95 : vector<64x256xf32>
    %97 = arith.mulf %96, %92 : vector<64x256xf32>
    %cst_42 = arith.constant 1.42141378 : f32
    %98 = vector.broadcast %cst_42 : f32 to vector<64x256xf32>
    %99 = arith.addf %97, %98 : vector<64x256xf32>
    %100 = arith.mulf %99, %92 : vector<64x256xf32>
    %cst_43 = arith.constant -0.284496725 : f32
    %101 = vector.broadcast %cst_43 : f32 to vector<64x256xf32>
    %102 = arith.addf %100, %101 : vector<64x256xf32>
    %103 = arith.mulf %102, %92 : vector<64x256xf32>
    %cst_44 = arith.constant 0.254829586 : f32
    %104 = vector.broadcast %cst_44 : f32 to vector<64x256xf32>
    %105 = arith.addf %103, %104 : vector<64x256xf32>
    %106 = arith.mulf %105, %92 : vector<64x256xf32>
    %cst_45 = arith.constant 0.000000e+00 : f32
    %107 = vector.broadcast %cst_45 : f32 to vector<64x256xf32>
    %108 = arith.subf %107, %87 : vector<64x256xf32>
    %109 = arith.mulf %108, %87 : vector<64x256xf32>
    %110 = math.exp %109 : vector<64x256xf32>
    %111 = arith.mulf %106, %110 : vector<64x256xf32>
    %cst_46 = arith.constant 1.000000e+00 : f32
    %112 = vector.broadcast %cst_46 : f32 to vector<64x256xf32>
    %113 = arith.subf %112, %111 : vector<64x256xf32>
    %cst_47 = arith.constant 0.000000e+00 : f32
    %114 = vector.broadcast %cst_47 : f32 to vector<64x256xf32>
    %115 = arith.cmpf oge, %86, %114 : vector<64x256xf32>
    %cst_48 = arith.constant 0.000000e+00 : f32
    %116 = vector.broadcast %cst_48 : f32 to vector<64x256xf32>
    %117 = arith.subf %116, %113 : vector<64x256xf32>
    %118 = arith.select %115, %113, %117 : vector<64x256xi1>, vector<64x256xf32>
    %cst_49 = arith.constant 5.000000e-01 : f32
    %119 = vector.broadcast %cst_49 : f32 to vector<64x256xf32>
    %120 = arith.mulf %119, %84 : vector<64x256xf32>
    %cst_50 = arith.constant 1.000000e+00 : f32
    %121 = vector.broadcast %cst_50 : f32 to vector<64x256xf32>
    %122 = arith.addf %121, %118 : vector<64x256xf32>
    %123 = arith.mulf %120, %122 : vector<64x256xf32>
    %c0_i32_51 = arith.constant 0 : i32
    %124 = arith.cmpi eq, %arg1, %c0_i32_51 : i32
    %125 = arith.extui %124 : i1 to i32
    %c0_i32_52 = arith.constant 0 : i32
    %126 = arith.cmpi ne, %125, %c0_i32_52 : i32
    scf.if %126 {
      %c0_i32_54 = arith.constant 0 : i32
      %130 = arith.cmpi eq, %arg2, %c0_i32_54 : i32
      %131 = arith.extui %130 : i1 to i32
      %c0_i32_55 = arith.constant 0 : i32
      %132 = arith.cmpi ne, %131, %c0_i32_55 : i32
      scf.if %132 {
        %cst_61 = arith.constant 0.000000e+00 : f32
        %139 = vector.broadcast %cst_61 : f32 to vector<1x256xf32>
        %c0_62 = arith.constant 0 : index
        %c0_63 = arith.constant 0 : index
        %140 = vector.load %arg17[%c0_62, %c0_63] : memref<1x256xf32, #tpu.memory_space<vmem>>, vector<1x256xf32>
        tpu.vector_store %arg17[%c0_62, %c0_63], %139 {strides = array<i32>} : memref<1x256xf32, #tpu.memory_space<vmem>>, vector<1x256xf32>,
      } else {
      }
      %c0_56 = arith.constant 0 : index
      %c0_57 = arith.constant 0 : index
      %133 = vector.load %arg17[%c0_56, %c0_57] : memref<1x256xf32, #tpu.memory_space<vmem>>, vector<1x256xf32>
      %134 = arith.mulf %123, %123 : vector<64x256xf32>
      %cst_58 = arith.constant dense<0.000000e+00> : vector<256xf32>
      %135 = vector.multi_reduction <add>, %134, %cst_58 [0] : vector<64x256xf32> to vector<256xf32>
      %136 = vector.shape_cast %135 : vector<256xf32> to vector<1x256xf32>
      %137 = arith.addf %133, %136 : vector<1x256xf32>
      %c0_59 = arith.constant 0 : index
      %c0_60 = arith.constant 0 : index
      %138 = vector.load %arg17[%c0_59, %c0_60] : memref<1x256xf32, #tpu.memory_space<vmem>>, vector<1x256xf32>
      tpu.vector_store %arg17[%c0_59, %c0_60], %137 {strides = array<i32>} : memref<1x256xf32, #tpu.memory_space<vmem>>, vector<1x256xf32>,
    } else {
    }
    %c1_i32 = arith.constant 1 : i32
    %127 = arith.cmpi eq, %arg1, %c1_i32 : i32
    %128 = arith.extui %127 : i1 to i32
    %c0_i32_53 = arith.constant 0 : i32
    %129 = arith.cmpi ne, %128, %c0_i32_53 : i32
    scf.if %129 {
      %c0_54 = arith.constant 0 : index
      %c0_55 = arith.constant 0 : index
      %130 = vector.load %arg17[%c0_54, %c0_55] : memref<1x256xf32, #tpu.memory_space<vmem>>, vector<1x256xf32>
      %131 = math.sqrt %130 : vector<1x256xf32>
      %cst_56 = arith.constant dense<0.000000e+00> : vector<1xf32>
      %132 = vector.multi_reduction <add>, %131, %cst_56 [1] : vector<1x256xf32> to vector<1xf32>
      %133 = vector.shape_cast %132 : vector<1xf32> to vector<1x1xf32>
      %cst_57 = arith.constant 2.560000e+02 : f32
      %134 = vector.broadcast %cst_57 : f32 to vector<1x1xf32>
      %135 = arith.divf %133, %134 : vector<1x1xf32>
      %cst_58 = arith.constant 9.99999997E-7 : f32
      %136 = vector.broadcast %cst_58 : f32 to vector<1x1xf32>
      %137 = arith.addf %135, %136 : vector<1x1xf32>
      %138 = vector.broadcast %137 : vector<1x1xf32> to vector<1x256xf32>
      %139 = arith.divf %131, %138 : vector<1x256xf32>
      %c0_59 = arith.constant 0 : index
      %c0_60 = arith.constant 0 : index
      %140 = vector.load %arg12[%c0_59, %c0_60] : memref<1x256xf32, #tpu.memory_space<vmem>>, vector<1x256xf32>
      %141 = arith.mulf %140, %139 : vector<1x256xf32>
      %cst_61 = arith.constant 1.000000e+00 : f32
      %142 = vector.broadcast %cst_61 : f32 to vector<1x256xf32>
      %143 = arith.addf %141, %142 : vector<1x256xf32>
      %144 = vector.broadcast %143 : vector<1x256xf32> to vector<64x256xf32>
      %145 = arith.mulf %123, %144 : vector<64x256xf32>
      %c0_62 = arith.constant 0 : index
      %c0_63 = arith.constant 0 : index
      %146 = vector.load %arg13[%c0_62, %c0_63] : memref<1x256xf32, #tpu.memory_space<vmem>>, vector<1x256xf32>
      %147 = vector.broadcast %146 : vector<1x256xf32> to vector<64x256xf32>
      %148 = arith.addf %145, %147 : vector<64x256xf32>
      %149 = arith.truncf %148 : vector<64x256xf32> to vector<64x256xbf16>
      %c0_64 = arith.constant 0 : index
      %c0_65 = arith.constant 0 : index
      %150 = vector.load %arg14[%c0_64, %c0_65] : memref<256x128xbf16, #tpu.memory_space<vmem>>, vector<256x128xbf16>
      %cst_66 = arith.constant dense<0.000000e+00> : vector<64x128xf32>
      %151 = tpu.matmul %149, %150, %cst_66 {dimension_numbers = #tpu.dot_dimension_numbers<[1], [0], [0], [1], [0, 0, 1, 1], [], []>} : vector<64x256xbf16>, vector<256x128xbf16>, vector<64x128xf32> -> vector<64x128xf32>
      %c0_67 = arith.constant 0 : index
      %c0_68 = arith.constant 0 : index
      %152 = vector.load %arg15[%c0_67, %c0_68] : memref<1x128xf32, #tpu.memory_space<vmem>>, vector<1x128xf32>
      %153 = vector.broadcast %152 : vector<1x128xf32> to vector<64x128xf32>
      %154 = arith.addf %151, %153 : vector<64x128xf32>
      %c0_69 = arith.constant 0 : index
      %c0_70 = arith.constant 0 : index
      %c0_71 = arith.constant 0 : index
      %155 = vector.load %arg3[%c0_69, %c0_70, %c0_71] : memref<1x64x128xf32, #tpu.memory_space<vmem>>, vector<1x64x128xf32>
      %156 = vector.shape_cast %155 : vector<1x64x128xf32> to vector<64x128xf32>
      %157 = arith.addf %156, %154 : vector<64x128xf32>
      %c0_72 = arith.constant 0 : index
      %c0_73 = arith.constant 0 : index
      %c0_74 = arith.constant 0 : index
      %158 = vector.load %arg16[%c0_72, %c0_73, %c0_74] : memref<1x64x128xf32, #tpu.memory_space<vmem>>, vector<1x64x128xf32>
      %159 = vector.shape_cast %158 : vector<1x64x128xf32> to vector<64x128xf32>
      %160 = vector.shape_cast %157 : vector<64x128xf32> to vector<1x64x128xf32>
      tpu.vector_store %arg16[%c0_72, %c0_73, %c0_74], %160 {strides = array<i32>} : memref<1x64x128xf32, #tpu.memory_space<vmem>>, vector<1x64x128xf32>,
    } else {
    }
    return
  }
  func.func @transform_0(%arg0: i32, %arg1: i32, %arg2: i32) -> (i32, i32, i32) {
    %c0_i32 = arith.constant 0 : i32
    %c0_i32_0 = arith.constant 0 : i32
    return %arg0, %arg2, %c0_i32 : i32, i32, i32
  }
  func.func @transform_1(%arg0: i32, %arg1: i32, %arg2: i32) -> (i32, i32, i32) {
    %c1_i32 = arith.constant 1 : i32
    %0 = arith.subi %arg2, %c1_i32 : i32
    %c0_i32 = arith.constant 0 : i32
    %1 = arith.maxsi %0, %c0_i32 : i32
    %c0_i32_0 = arith.constant 0 : i32
    %c0_i32_1 = arith.constant 0 : i32
    return %arg0, %1, %c0_i32_0 : i32, i32, i32
  }
  func.func @transform_2(%arg0: i32, %arg1: i32, %arg2: i32) -> (i32, i32, i32) {
    %c1_i32 = arith.constant 1 : i32
    %0 = arith.addi %arg2, %c1_i32 : i32
    %c3_i32 = arith.constant 3 : i32
    %1 = arith.minsi %0, %c3_i32 : i32
    %c0_i32 = arith.constant 0 : i32
    %c0_i32_0 = arith.constant 0 : i32
    return %arg0, %1, %c0_i32 : i32, i32, i32
  }
  func.func @transform_3(%arg0: i32, %arg1: i32, %arg2: i32) -> (i32, i32) {
    %c0_i32 = arith.constant 0 : i32
    %c0_i32_0 = arith.constant 0 : i32
    %c0_i32_1 = arith.constant 0 : i32
    return %c0_i32, %c0_i32_0 : i32, i32
  }
  func.func @transform_4(%arg0: i32, %arg1: i32, %arg2: i32) -> (i32, i32) {
    %c0_i32 = arith.constant 0 : i32
    %c0_i32_0 = arith.constant 0 : i32
    %c0_i32_1 = arith.constant 0 : i32
    return %c0_i32, %c0_i32_0 : i32, i32
  }
  func.func @transform_5(%arg0: i32, %arg1: i32, %arg2: i32) -> (i32, i32) {
    %c0_i32 = arith.constant 0 : i32
    %c0_i32_0 = arith.constant 0 : i32
    %c0_i32_1 = arith.constant 0 : i32
    return %c0_i32, %c0_i32_0 : i32, i32
  }
  func.func @transform_6(%arg0: i32, %arg1: i32, %arg2: i32) -> (i32, i32) {
    %c0_i32 = arith.constant 0 : i32
    %c0_i32_0 = arith.constant 0 : i32
    %c0_i32_1 = arith.constant 0 : i32
    return %c0_i32, %c0_i32_0 : i32, i32
  }
  func.func @transform_7(%arg0: i32, %arg1: i32, %arg2: i32) -> (i32, i32) {
    %c0_i32 = arith.constant 0 : i32
    %c0_i32_0 = arith.constant 0 : i32
    %c0_i32_1 = arith.constant 0 : i32
    return %c0_i32, %c0_i32_0 : i32, i32
  }
  func.func @transform_8(%arg0: i32, %arg1: i32, %arg2: i32) -> (i32, i32) {
    %c0_i32 = arith.constant 0 : i32
    %c0_i32_0 = arith.constant 0 : i32
    %c0_i32_1 = arith.constant 0 : i32
    return %c0_i32, %c0_i32_0 : i32, i32
  }
  func.func @transform_9(%arg0: i32, %arg1: i32, %arg2: i32) -> (i32, i32) {
    %c0_i32 = arith.constant 0 : i32
    %c0_i32_0 = arith.constant 0 : i32
    %c0_i32_1 = arith.constant 0 : i32
    return %c0_i32, %c0_i32_0 : i32, i32
  }
  func.func @transform_10(%arg0: i32, %arg1: i32, %arg2: i32) -> (i32, i32) {
    %c0_i32 = arith.constant 0 : i32
    %c0_i32_0 = arith.constant 0 : i32
    %c0_i32_1 = arith.constant 0 : i32
    return %c0_i32, %c0_i32_0 : i32, i32
  }
  func.func @transform_11(%arg0: i32, %arg1: i32, %arg2: i32) -> (i32, i32) {
    %c0_i32 = arith.constant 0 : i32
    %c0_i32_0 = arith.constant 0 : i32
    %c0_i32_1 = arith.constant 0 : i32
    return %c0_i32, %c0_i32_0 : i32, i32
  }
  func.func @transform_12(%arg0: i32, %arg1: i32, %arg2: i32) -> (i32, i32) {
    %c0_i32 = arith.constant 0 : i32
    %c0_i32_0 = arith.constant 0 : i32
    %c0_i32_1 = arith.constant 0 : i32
    return %c0_i32, %c0_i32_0 : i32, i32
  }
  func.func @transform_13(%arg0: i32, %arg1: i32, %arg2: i32) -> (i32, i32, i32) {
    %c1_i32 = arith.constant 1 : i32
    %0 = arith.cmpi eq, %arg1, %c1_i32 : i32
    %c0_i32 = arith.constant 0 : i32
    %1 = arith.select %0, %arg2, %c0_i32 : i32
    %c0_i32_0 = arith.constant 0 : i32
    %c0_i32_1 = arith.constant 0 : i32
    return %arg0, %1, %c0_i32_0 : i32, i32, i32
  }
}

</mosaic_0001>

<llo_original>
// kernel: tpu_custom_call.1
$region0: #{tpu_custom_call.1}
  #allocation0 [shape = 'u32[]', space=smem, size = 0x4, offset = 0x4, fixed_abs, tag = 'smem constant byte address 0x4 - core index']
  #allocation1 [shape = 'u32[144,128]{1,0:T(1,128)}', space=vmem, size = 0x12000, scoped, tag = 'internal scratch']
  #allocation2 [shape = 'f32[1,256]{1,0:T(1,128)}', space=vmem, size = 0x400, scoped, tag = 'scratch operand']
  #allocation3 [shape = 'f32[70,128]{1,0:T(8,128)}', space=vmem, size = 0x9000, scoped, tag = 'scratch operand']
  %s0 = inlined_call_operand.hbm [shape: f32[2,256,128], index: 0, kind: input, shape index: {}]
  %s1 = inlined_call_operand.hbm [shape: f32[2,256,128], index: 1, kind: input, shape index: {}]
  %s2 = inlined_call_operand.hbm [shape: f32[2,256,128], index: 2, kind: input, shape index: {}]
  %s3 = inlined_call_operand.hbm [shape: f32[7,128], index: 3, kind: input, shape index: {}]
  %s4 = inlined_call_operand.hbm [shape: f32[1,128], index: 4, kind: input, shape index: {}]
  %s5 = inlined_call_operand.hbm [shape: f32[1,128], index: 5, kind: input, shape index: {}]
  %s6 = inlined_call_operand.hbm [shape: f32[1,128], index: 6, kind: input, shape index: {}]
  %s7 = inlined_call_operand.hbm [shape: bf16[128,256], index: 7, kind: input, shape index: {}]
  %s8 = inlined_call_operand.hbm [shape: f32[1,256], index: 8, kind: input, shape index: {}]
  %s9 = inlined_call_operand.hbm [shape: f32[1,256], index: 9, kind: input, shape index: {}]
  %s10 = inlined_call_operand.hbm [shape: f32[1,256], index: 10, kind: input, shape index: {}]
  %s11 = inlined_call_operand.hbm [shape: bf16[256,128], index: 11, kind: input, shape index: {}]
  %s12 = inlined_call_operand.hbm [shape: f32[1,128], index: 12, kind: input, shape index: {}]
  %s13 = inlined_call_operand.hbm [shape: f32[2,256,128], index: 13, kind: output, shape index: {}]
  %s14 = sld [smem:[#allocation0]]
  $region149: #{tpu_custom_call.1} parent=0
    _
  %s16 = ssub.s32 1, %s14
  %s17 = scalar_select 0, %s16, %s14
  $region1: #{tpu_custom_call.1} parent=0
    #allocation4 [shape = 'u8[65536]{0}', space=vmem, size = 0x10000, scoped, tag = 'input window, operand 0']
    #allocation5 [shape = 's32[2]{0}', space=sflag, size = 0x8, scoped, tag = 'scoped memory for tpu_custom_call.1']
    #allocation6 [shape = 's32[2]{0}', space=sflag, size = 0x8, scoped, tag = 'scoped memory for tpu_custom_call.1']
    #allocation7 [shape = 'u8[65536]{0}', space=vmem, size = 0x10000, scoped, tag = 'input window, operand 1']
    #allocation8 [shape = 's32[2]{0}', space=sflag, size = 0x8, scoped, tag = 'scoped memory for tpu_custom_call.1']
    #allocation9 [shape = 'u8[65536]{0}', space=vmem, size = 0x10000, scoped, tag = 'input window, operand 2']
    #allocation10 [shape = 'u8[4096]{0}', space=vmem, size = 0x1000, scoped, tag = 'input window, operand 3, single buffered']
    #allocation11 [shape = 's32[1]{0}', space=sflag, size = 0x4, scoped, tag = 'scoped memory for tpu_custom_call.1']
    #allocation12 [shape = 'u8[512]{0}', space=vmem, size = 0x400, scoped, tag = 'input window, operand 4, single buffered']
    #allocation13 [shape = 'u8[512]{0}', space=vmem, size = 0x400, scoped, tag = 'input window, operand 5, single buffered']
    #allocation14 [shape = 's32[1]{0}', space=sflag, size = 0x4, scoped, tag = 'scoped memory for tpu_custom_call.1']
    #allocation15 [shape = 'u8[512]{0}', space=vmem, size = 0x400, scoped, tag = 'input window, operand 6, single buffered']
    #allocation16 [shape = 'u8[65536]{0}', space=vmem, size = 0x10000, scoped, tag = 'input window, operand 7, single buffered']
    #allocation17 [shape = 's32[1]{0}', space=sflag, size = 0x4, scoped, tag = 'scoped memory for tpu_custom_call.1']
    #allocation18 [shape = 'u8[1024]{0}', space=vmem, size = 0x400, scoped, tag = 'input window, operand 8, single buffered']
    #allocation19 [shape = 'u8[1024]{0}', space=vmem, size = 0x400, scoped, tag = 'input window, operand 9, single buffered']
    #allocation20 [shape = 's32[1]{0}', space=sflag, size = 0x4, scoped, tag = 'scoped memory for tpu_custom_call.1']
    #allocation21 [shape = 'u8[1024]{0}', space=vmem, size = 0x400, scoped, tag = 'input window, operand 10, single buffered']
    #allocation22 [shape = 'u8[65536]{0}', space=vmem, size = 0x10000, scoped, tag = 'input window, operand 11, single buffered']
    #allocation23 [shape = 's32[1]{0}', space=sflag, size = 0x4, scoped, tag = 'scoped memory for tpu_custom_call.1']
    #allocation24 [shape = 'u8[512]{0}', space=vmem, size = 0x400, scoped, tag = 'input window, operand 12, single buffered']
    #allocation25 [shape = 'u8[65536]{0}', space=vmem, size = 0x10000, scoped, tag = 'output window, operand 0']
    %18 = vsyncpa [#allocation5], 0
    %s19 = scalar_lea.sflag [#allocation5], 1
    %20 = vsyncpa %s19, 0
    %21 = vsyncpa [#allocation8], 0
    %s22 = scalar_lea.sflag [#allocation8], 1
    %23 = vsyncpa %s22, 0
    %24 = vsyncpa [#allocation11], 0
    %25 = vsyncpa [#allocation14], 0
    %26 = vsyncpa [#allocation17], 0
    %27 = vsyncpa [#allocation20], 0
    %28 = vsyncpa [#allocation23], 0
    %29 = vsyncpa [#allocation6], 0
    %s30 = scalar_lea.sflag [#allocation6], 1
    %31 = vsyncpa %s30, 0
    loop: start=0, step=1, limit=18
    $region2: #{tpu_custom_call.1} parent=1 // loop_pre_header
      _
    $region3: #{tpu_custom_call.1} parent=1 // loop_header
      %s33 = sphi 0, %s37
      %p34 = scmp.ge.s32.totalorder %s33, 18
      %s40 = sphi 0, %s59
      %s41 = sphi 0, %s55
      %s42 = sphi 0, %s51
      %s43 = sphi 0, %s40
      %s44 = sphi 0, %s41
      %s45 = sphi 0, %s42
      %s46 = sphi 0, %s43
      %s47 = sphi 0, %s44
      %s48 = sphi 0, %s45
      %s64 = sphi 0, %s66
      %s67 = sphi 0, %s64
      %s68 = sphi 0, %s67
      %s84 = sphi 0, %s68
      %s98 = sphi 0, %s100
      %s101 = sphi 0, %s98
      %s102 = sphi 0, %s101
      %s118 = sphi 0, %s102
      %s132 = sphi 0, %s134
      %s135 = sphi 0, %s132
      %s136 = sphi 0, %s135
      %s152 = sphi 0, %s136
      %s156 = sphi 0, %s156
      %s158 = sphi 0, %s156
      %s159 = sphi 0, %s158
      %s173 = sphi 0, %s159
      %s177 = sphi 0, %s177
      %s179 = sphi 0, %s177
      %s180 = sphi 0, %s179
      %s194 = sphi 0, %s180
      %s198 = sphi 0, %s198
      %s200 = sphi 0, %s198
      %s201 = sphi 0, %s200
      %s215 = sphi 0, %s201
      %s219 = sphi 0, %s219
      %s221 = sphi 0, %s219
      %s222 = sphi 0, %s221
      %s236 = sphi 0, %s222
      %s240 = sphi 0, %s240
      %s242 = sphi 0, %s240
      %s243 = sphi 0, %s242
      %s257 = sphi 0, %s243
      %s261 = sphi 0, %s261
      %s263 = sphi 0, %s261
      %s264 = sphi 0, %s263
      %s278 = sphi 0, %s264
      %s282 = sphi 0, %s282
      %s284 = sphi 0, %s282
      %s285 = sphi 0, %s284
      %s299 = sphi 0, %s285
      %s303 = sphi 0, %s303
      %s305 = sphi 0, %s303
      %s306 = sphi 0, %s305
      %s320 = sphi 0, %s306
      %s324 = sphi 0, %s324
      %s326 = sphi 0, %s324
      %s327 = sphi 0, %s326
      %s341 = sphi 0, %s327
      %s345 = sphi 0, %s345
      %s347 = sphi 0, %s345
      %s348 = sphi 0, %s347
      %s362 = sphi 0, %s348
      %s374 = sphi 0, %s376
      %s377 = sphi 0, %s374
      %s378 = sphi 0, %s377
      %s394 = sphi 0, %s378
    $region4: #{tpu_custom_call.1} parent=1 // loop_header_branch
      %36 = sbr.rel (%p34) target = $region8
    $region5: #{tpu_custom_call.1} parent=1 // loop_body
      %s38 = ssub.s32 %s33, 1
      %s39 = ssub.s32 %s33, 2
      %s49 = sadd.s32 1, %s42
      %p50 = scmp.ge.s32.totalorder %s49, 4
      %s51 = scalar_select %p50, 0, %s49
      %s52 = sadd.s32 1, %s41
      %s53 = scalar_select %p50, %s52, %s41
      %p54 = scmp.ge.s32.totalorder %s53, 2
      %s55 = scalar_select %p54, 0, %s53
      %s56 = sadd.s32 1, %s40
      %s57 = scalar_select %p54, %s56, %s40
      %p58 = scmp.ge.s32.totalorder %s57, 2
      %s59 = scalar_select %p58, 0, %s57
      %s60 = ssub.s32 %s40, %s59
      %s61 = ssub.s32 %s42, %s51
      %s62 = sor.u32 %s60, %s61
      %p63 = scmp.eq.s32.totalorder %s62, 0
      %s65 = sadd.s32 %s64, 1
      %s66 = scalar_select %p63, %s64, %s65
      %p69 = pneg %p63
      %p70 = scmp.eq.s32.totalorder %s33, 15
      %p71 = por %p69, %p70
      %p72 = scmp.ne.s32.totalorder %s64, %s67
      %p73 = scmp.eq.s32.totalorder %s33, 0
      %p74 = por %p72, %p73
      %p75 = scmp.ne.s32.totalorder %s64, %s67
      %p76 = scmp.eq.s32.totalorder %s38, 15
      %p77 = por %p75, %p76
      %p78 = scmp.ne.s32.totalorder %s67, %s68
      %p79 = scmp.eq.s32.totalorder %s38, 0
      %p80 = por %p78, %p79
      %p81 = scmp.ne.s32.totalorder %s67, %s68
      %p82 = scmp.eq.s32.totalorder %s39, 15
      %p83 = por %p81, %p82
      %p85 = scmp.ne.s32.totalorder %s68, %s84
      %p86 = scmp.eq.s32.totalorder %s39, 0
      %p87 = por %p85, %p86
      %s88 = ssub.s32 %s42, 1
      %p89 = scmp.gt.s32.totalorder %s88, 0
      %s90 = scalar_select %p89, %s88, 0
      %s91 = ssub.s32 %s51, 1
      %p92 = scmp.gt.s32.totalorder %s91, 0
      %s93 = scalar_select %p92, %s91, 0
      %s94 = ssub.s32 %s40, %s59
      %s95 = ssub.s32 %s90, %s93
      %s96 = sor.u32 %s94, %s95
      %p97 = scmp.eq.s32.totalorder %s96, 0
      %s99 = sadd.s32 %s98, 1
      %s100 = scalar_select %p97, %s98, %s99
      %p103 = pneg %p97
      %p104 = scmp.eq.s32.totalorder %s33, 15
      %p105 = por %p103, %p104
      %p106 = scmp.ne.s32.totalorder %s98, %s101
      %p107 = scmp.eq.s32.totalorder %s33, 0
      %p108 = por %p106, %p107
      %p109 = scmp.ne.s32.totalorder %s98, %s101
      %p110 = scmp.eq.s32.totalorder %s38, 15
      %p111 = por %p109, %p110
      %p112 = scmp.ne.s32.totalorder %s101, %s102
      %p113 = scmp.eq.s32.totalorder %s38, 0
      %p114 = por %p112, %p113
      %p115 = scmp.ne.s32.totalorder %s101, %s102
      %p116 = scmp.eq.s32.totalorder %s39, 15
      %p117 = por %p115, %p116
      %p119 = scmp.ne.s32.totalorder %s102, %s118
      %p120 = scmp.eq.s32.totalorder %s39, 0
      %p121 = por %p119, %p120
      %s122 = sadd.s32 %s42, 1
      %p123 = scmp.lt.s32.totalorder %s122, 3
      %s124 = scalar_select %p123, %s122, 3
      %s125 = sadd.s32 %s51, 1
      %p126 = scmp.lt.s32.totalorder %s125, 3
      %s127 = scalar_select %p126, %s125, 3
      %s128 = ssub.s32 %s40, %s59
      %s129 = ssub.s32 %s124, %s127
      %s130 = sor.u32 %s128, %s129
      %p131 = scmp.eq.s32.totalorder %s130, 0
      %s133 = sadd.s32 %s132, 1
      %s134 = scalar_select %p131, %s132, %s133
      %p137 = pneg %p131
      %p138 = scmp.eq.s32.totalorder %s33, 15
      %p139 = por %p137, %p138
      %p140 = scmp.ne.s32.totalorder %s132, %s135
      %p141 = scmp.eq.s32.totalorder %s33, 0
      %p142 = por %p140, %p141
      %p143 = scmp.ne.s32.totalorder %s132, %s135
      %p144 = scmp.eq.s32.totalorder %s38, 15
      %p145 = por %p143, %p144
      %p146 = scmp.ne.s32.totalorder %s135, %s136
      %p147 = scmp.eq.s32.totalorder %s38, 0
      %p148 = por %p146, %p147
      %p149 = scmp.ne.s32.totalorder %s135, %s136
      %p150 = scmp.eq.s32.totalorder %s39, 15
      %p151 = por %p149, %p150
      %p153 = scmp.ne.s32.totalorder %s136, %s152
      %p154 = scmp.eq.s32.totalorder %s39, 0
      %p155 = por %p153, %p154
      %s157 = sadd.s32 %s156, 1
      %p160 = scmp.eq.s32.totalorder %s33, 15
      %p161 = scmp.ne.s32.totalorder %s156, %s158
      %p162 = scmp.eq.s32.totalorder %s33, 0
      %p163 = por %p161, %p162
      %p164 = scmp.ne.s32.totalorder %s156, %s158
      %p165 = scmp.eq.s32.totalorder %s38, 15
      %p166 = por %p164, %p165
      %p167 = scmp.ne.s32.totalorder %s158, %s159
      %p168 = scmp.eq.s32.totalorder %s38, 0
      %p169 = por %p167, %p168
      %p170 = scmp.ne.s32.totalorder %s158, %s159
      %p171 = scmp.eq.s32.totalorder %s39, 15
      %p172 = por %p170, %p171
      %p174 = scmp.ne.s32.totalorder %s159, %s173
      %p175 = scmp.eq.s32.totalorder %s39, 0
      %p176 = por %p174, %p175
      %s178 = sadd.s32 %s177, 1
      %p181 = scmp.eq.s32.totalorder %s33, 15
      %p182 = scmp.ne.s32.totalorder %s177, %s179
      %p183 = scmp.eq.s32.totalorder %s33, 0
      %p184 = por %p182, %p183
      %p185 = scmp.ne.s32.totalorder %s177, %s179
      %p186 = scmp.eq.s32.totalorder %s38, 15
      %p187 = por %p185, %p186
      %p188 = scmp.ne.s32.totalorder %s179, %s180
      %p189 = scmp.eq.s32.totalorder %s38, 0
      %p190 = por %p188, %p189
      %p191 = scmp.ne.s32.totalorder %s179, %s180
      %p192 = scmp.eq.s32.totalorder %s39, 15
      %p193 = por %p191, %p192
      %p195 = scmp.ne.s32.totalorder %s180, %s194
      %p196 = scmp.eq.s32.totalorder %s39, 0
      %p197 = por %p195, %p196
      %s199 = sadd.s32 %s198, 1
      %p202 = scmp.eq.s32.totalorder %s33, 15
      %p203 = scmp.ne.s32.totalorder %s198, %s200
      %p204 = scmp.eq.s32.totalorder %s33, 0
      %p205 = por %p203, %p204
      %p206 = scmp.ne.s32.totalorder %s198, %s200
      %p207 = scmp.eq.s32.totalorder %s38, 15
      %p208 = por %p206, %p207
      %p209 = scmp.ne.s32.totalorder %s200, %s201
      %p210 = scmp.eq.s32.totalorder %s38, 0
      %p211 = por %p209, %p210
      %p212 = scmp.ne.s32.totalorder %s200, %s201
      %p213 = scmp.eq.s32.totalorder %s39, 15
      %p214 = por %p212, %p213
      %p216 = scmp.ne.s32.totalorder %s201, %s215
      %p217 = scmp.eq.s32.totalorder %s39, 0
      %p218 = por %p216, %p217
      %s220 = sadd.s32 %s219, 1
      %p223 = scmp.eq.s32.totalorder %s33, 15
      %p224 = scmp.ne.s32.totalorder %s219, %s221
      %p225 = scmp.eq.s32.totalorder %s33, 0
      %p226 = por %p224, %p225
      %p227 = scmp.ne.s32.totalorder %s219, %s221
      %p228 = scmp.eq.s32.totalorder %s38, 15
      %p229 = por %p227, %p228
      %p230 = scmp.ne.s32.totalorder %s221, %s222
      %p231 = scmp.eq.s32.totalorder %s38, 0
      %p232 = por %p230, %p231
      %p233 = scmp.ne.s32.totalorder %s221, %s222
      %p234 = scmp.eq.s32.totalorder %s39, 15
      %p235 = por %p233, %p234
      %p237 = scmp.ne.s32.totalorder %s222, %s236
      %p238 = scmp.eq.s32.totalorder %s39, 0
      %p239 = por %p237, %p238
      %s241 = sadd.s32 %s240, 1
      %p244 = scmp.eq.s32.totalorder %s33, 15
      %p245 = scmp.ne.s32.totalorder %s240, %s242
      %p246 = scmp.eq.s32.totalorder %s33, 0
      %p247 = por %p245, %p246
      %p248 = scmp.ne.s32.totalorder %s240, %s242
      %p249 = scmp.eq.s32.totalorder %s38, 15
      %p250 = por %p248, %p249
      %p251 = scmp.ne.s32.totalorder %s242, %s243
      %p252 = scmp.eq.s32.totalorder %s38, 0
      %p253 = por %p251, %p252
      %p254 = scmp.ne.s32.totalorder %s242, %s243
      %p255 = scmp.eq.s32.totalorder %s39, 15
      %p256 = por %p254, %p255
      %p258 = scmp.ne.s32.totalorder %s243, %s257
      %p259 = scmp.eq.s32.totalorder %s39, 0
      %p260 = por %p258, %p259
      %s262 = sadd.s32 %s261, 1
      %p265 = scmp.eq.s32.totalorder %s33, 15
      %p266 = scmp.ne.s32.totalorder %s261, %s263
      %p267 = scmp.eq.s32.totalorder %s33, 0
      %p268 = por %p266, %p267
      %p269 = scmp.ne.s32.totalorder %s261, %s263
      %p270 = scmp.eq.s32.totalorder %s38, 15
      %p271 = por %p269, %p270
      %p272 = scmp.ne.s32.totalorder %s263, %s264
      %p273 = scmp.eq.s32.totalorder %s38, 0
      %p274 = por %p272, %p273
      %p275 = scmp.ne.s32.totalorder %s263, %s264
      %p276 = scmp.eq.s32.totalorder %s39, 15
      %p277 = por %p275, %p276
      %p279 = scmp.ne.s32.totalorder %s264, %s278
      %p280 = scmp.eq.s32.totalorder %s39, 0
      %p281 = por %p279, %p280
      %s283 = sadd.s32 %s282, 1
      %p286 = scmp.eq.s32.totalorder %s33, 15
      %p287 = scmp.ne.s32.totalorder %s282, %s284
      %p288 = scmp.eq.s32.totalorder %s33, 0
      %p289 = por %p287, %p288
      %p290 = scmp.ne.s32.totalorder %s282, %s284
      %p291 = scmp.eq.s32.totalorder %s38, 15
      %p292 = por %p290, %p291
      %p293 = scmp.ne.s32.totalorder %s284, %s285
      %p294 = scmp.eq.s32.totalorder %s38, 0
      %p295 = por %p293, %p294
      %p296 = scmp.ne.s32.totalorder %s284, %s285
      %p297 = scmp.eq.s32.totalorder %s39, 15
      %p298 = por %p296, %p297
      %p300 = scmp.ne.s32.totalorder %s285, %s299
      %p301 = scmp.eq.s32.totalorder %s39, 0
      %p302 = por %p300, %p301
      %s304 = sadd.s32 %s303, 1
      %p307 = scmp.eq.s32.totalorder %s33, 15
      %p308 = scmp.ne.s32.totalorder %s303, %s305
      %p309 = scmp.eq.s32.totalorder %s33, 0
      %p310 = por %p308, %p309
      %p311 = scmp.ne.s32.totalorder %s303, %s305
      %p312 = scmp.eq.s32.totalorder %s38, 15
      %p313 = por %p311, %p312
      %p314 = scmp.ne.s32.totalorder %s305, %s306
      %p315 = scmp.eq.s32.totalorder %s38, 0
      %p316 = por %p314, %p315
      %p317 = scmp.ne.s32.totalorder %s305, %s306
      %p318 = scmp.eq.s32.totalorder %s39, 15
      %p319 = por %p317, %p318
      %p321 = scmp.ne.s32.totalorder %s306, %s320
      %p322 = scmp.eq.s32.totalorder %s39, 0
      %p323 = por %p321, %p322
      %s325 = sadd.s32 %s324, 1
      %p328 = scmp.eq.s32.totalorder %s33, 15
      %p329 = scmp.ne.s32.totalorder %s324, %s326
      %p330 = scmp.eq.s32.totalorder %s33, 0
      %p331 = por %p329, %p330
      %p332 = scmp.ne.s32.totalorder %s324, %s326
      %p333 = scmp.eq.s32.totalorder %s38, 15
      %p334 = por %p332, %p333
      %p335 = scmp.ne.s32.totalorder %s326, %s327
      %p336 = scmp.eq.s32.totalorder %s38, 0
      %p337 = por %p335, %p336
      %p338 = scmp.ne.s32.totalorder %s326, %s327
      %p339 = scmp.eq.s32.totalorder %s39, 15
      %p340 = por %p338, %p339
      %p342 = scmp.ne.s32.totalorder %s327, %s341
      %p343 = scmp.eq.s32.totalorder %s39, 0
      %p344 = por %p342, %p343
      %s346 = sadd.s32 %s345, 1
      %p349 = scmp.eq.s32.totalorder %s33, 15
      %p350 = scmp.ne.s32.totalorder %s345, %s347
      %p351 = scmp.eq.s32.totalorder %s33, 0
      %p352 = por %p350, %p351
      %p353 = scmp.ne.s32.totalorder %s345, %s347
      %p354 = scmp.eq.s32.totalorder %s38, 15
      %p355 = por %p353, %p354
      %p356 = scmp.ne.s32.totalorder %s347, %s348
      %p357 = scmp.eq.s32.totalorder %s38, 0
      %p358 = por %p356, %p357
      %p359 = scmp.ne.s32.totalorder %s347, %s348
      %p360 = scmp.eq.s32.totalorder %s39, 15
      %p361 = por %p359, %p360
      %p363 = scmp.ne.s32.totalorder %s348, %s362
      %p364 = scmp.eq.s32.totalorder %s39, 0
      %p365 = por %p363, %p364
      %p366 = scmp.eq.s32.totalorder %s41, 1
      %s367 = scalar_select %p366, %s42, 0
      %p368 = scmp.eq.s32.totalorder %s55, 1
      %s369 = scalar_select %p368, %s51, 0
      %s370 = ssub.s32 %s40, %s59
      %s371 = ssub.s32 %s367, %s369
      %s372 = sor.u32 %s370, %s371
      %p373 = scmp.eq.s32.totalorder %s372, 0
      %s375 = sadd.s32 %s374, 1
      %s376 = scalar_select %p373, %s374, %s375
      %p379 = pneg %p373
      %p380 = scmp.eq.s32.totalorder %s33, 15
      %p381 = por %p379, %p380
      %p382 = scmp.ne.s32.totalorder %s374, %s377
      %p383 = scmp.eq.s32.totalorder %s33, 0
      %p384 = por %p382, %p383
      %p385 = scmp.ne.s32.totalorder %s374, %s377
      %p386 = scmp.eq.s32.totalorder %s38, 15
      %p387 = por %p385, %p386
      %p388 = scmp.ne.s32.totalorder %s377, %s378
      %p389 = scmp.eq.s32.totalorder %s38, 0
      %p390 = por %p388, %p389
      %p391 = scmp.ne.s32.totalorder %s377, %s378
      %p392 = scmp.eq.s32.totalorder %s39, 15
      %p393 = por %p391, %p392
      %p395 = scmp.ne.s32.totalorder %s378, %s394
      %p396 = scmp.eq.s32.totalorder %s39, 0
      %p397 = por %p395, %p396
      %p398 = scmp.le.s32.totalorder 1, %s33
      %p399 = scmp.lt.s32.totalorder %s33, 17
      %p400 = pnand %p398, %p399
      %p401 = pneg %p400
      // Predicated region
      $region9: #{tpu_custom_call.1} parent=5 // pred_check
        _
      $region10: #{tpu_custom_call.1} parent=5 // pred_check_branch
        %403 = sbr.rel (%p400) target = $region12
      $region11: #{tpu_custom_call.1} parent=5 // pred_region
        %s404 = ssub.s32 %s33, 1
        // Predicated region
        $region13: #{tpu_custom_call.1} parent=11 // pred_check
          %p405 = pneg %p169
        $region14: #{tpu_custom_call.1} parent=11 // pred_check_branch
          %407 = sbr.rel (%p405) target = $region16
        $region15: #{tpu_custom_call.1} parent=11 // pred_region
          %s409 = ssub.s32 128, 128
          %410 = vsyncadd [#allocation11], %s409
          %s412 = sshll.u32 [#allocation10], 4
          %s413 = int_to_ptr.vmem [resolvable:$true] %s412
          %415 = dma.hbm_to_vmem [thread:$0]  %s3, 128, %s413, [#allocation11]
        $region16: #{tpu_custom_call.1} parent=11 // pred_fallthru
          _
        // Predicated region
        $region17: #{tpu_custom_call.1} parent=11 // pred_check
          %p416 = pneg %p190
        $region18: #{tpu_custom_call.1} parent=11 // pred_check_branch
          %418 = sbr.rel (%p416) target = $region20
        $region19: #{tpu_custom_call.1} parent=11 // pred_region
          %s420 = ssub.s32 16, 16
          %421 = vsyncadd [#allocation11], %s420
          %s423 = sshll.u32 [#allocation12], 4
          %s424 = int_to_ptr.vmem [resolvable:$true] %s423
          %426 = dma.hbm_to_vmem [thread:$0]  %s4, 16, %s424, [#allocation11]
        $region20: #{tpu_custom_call.1} parent=11 // pred_fallthru
          _
        // Predicated region
        $region21: #{tpu_custom_call.1} parent=11 // pred_check
          %p427 = pneg %p211
        $region22: #{tpu_custom_call.1} parent=11 // pred_check_branch
          %429 = sbr.rel (%p427) target = $region24
        $region23: #{tpu_custom_call.1} parent=11 // pred_region
          %s431 = ssub.s32 16, 16
          %432 = vsyncadd [#allocation14], %s431
          %s434 = sshll.u32 [#allocation13], 4
          %s435 = int_to_ptr.vmem [resolvable:$true] %s434
          %437 = dma.hbm_to_vmem [thread:$0]  %s5, 16, %s435, [#allocation14]
        $region24: #{tpu_custom_call.1} parent=11 // pred_fallthru
          _
        // Predicated region
        $region25: #{tpu_custom_call.1} parent=11 // pred_check
          %p438 = pneg %p232
        $region26: #{tpu_custom_call.1} parent=11 // pred_check_branch
          %440 = sbr.rel (%p438) target = $region28
        $region27: #{tpu_custom_call.1} parent=11 // pred_region
          %s442 = ssub.s32 16, 16
          %443 = vsyncadd [#allocation14], %s442
          %s445 = sshll.u32 [#allocation15], 4
          %s446 = int_to_ptr.vmem [resolvable:$true] %s445
          %448 = dma.hbm_to_vmem [thread:$0]  %s6, 16, %s446, [#allocation14]
        $region28: #{tpu_custom_call.1} parent=11 // pred_fallthru
          _
        // Predicated region
        $region29: #{tpu_custom_call.1} parent=11 // pred_check
          %p449 = pneg %p253
        $region30: #{tpu_custom_call.1} parent=11 // pred_check_branch
          %451 = sbr.rel (%p449) target = $region32
        $region31: #{tpu_custom_call.1} parent=11 // pred_region
          %s453 = ssub.s32 2048, 2048
          %454 = vsyncadd [#allocation17], %s453
          %s455 = sshll.u32 [#allocation16], 4
          %s456 = int_to_ptr.vmem [resolvable:$true] %s455
          %461 = dma.hbm_to_vmem [thread:$0]  %s7, 2048, %s456, [#allocation17], 128, 128, 8
        $region32: #{tpu_custom_call.1} parent=11 // pred_fallthru
          _
        // Predicated region
        $region33: #{tpu_custom_call.1} parent=11 // pred_check
          %p462 = pneg %p274
        $region34: #{tpu_custom_call.1} parent=11 // pred_check_branch
          %464 = sbr.rel (%p462) target = $region36
        $region35: #{tpu_custom_call.1} parent=11 // pred_region
          %s466 = ssub.s32 32, 32
          %467 = vsyncadd [#allocation17], %s466
          %s469 = sshll.u32 [#allocation18], 4
          %s470 = int_to_ptr.vmem [resolvable:$true] %s469
          %472 = dma.hbm_to_vmem [thread:$0]  %s8, 32, %s470, [#allocation17]
        $region36: #{tpu_custom_call.1} parent=11 // pred_fallthru
          _
        // Predicated region
        $region37: #{tpu_custom_call.1} parent=11 // pred_check
          %p473 = pneg %p295
        $region38: #{tpu_custom_call.1} parent=11 // pred_check_branch
          %475 = sbr.rel (%p473) target = $region40
        $region39: #{tpu_custom_call.1} parent=11 // pred_region
          %s477 = ssub.s32 32, 32
          %478 = vsyncadd [#allocation20], %s477
          %s480 = sshll.u32 [#allocation19], 4
          %s481 = int_to_ptr.vmem [resolvable:$true] %s480
          %483 = dma.hbm_to_vmem [thread:$0]  %s9, 32, %s481, [#allocation20]
        $region40: #{tpu_custom_call.1} parent=11 // pred_fallthru
          _
        // Predicated region
        $region41: #{tpu_custom_call.1} parent=11 // pred_check
          %p484 = pneg %p316
        $region42: #{tpu_custom_call.1} parent=11 // pred_check_branch
          %486 = sbr.rel (%p484) target = $region44
        $region43: #{tpu_custom_call.1} parent=11 // pred_region
          %s488 = ssub.s32 32, 32
          %489 = vsyncadd [#allocation20], %s488
          %s491 = sshll.u32 [#allocation21], 4
          %s492 = int_to_ptr.vmem [resolvable:$true] %s491
          %494 = dma.hbm_to_vmem [thread:$0]  %s10, 32, %s492, [#allocation20]
        $region44: #{tpu_custom_call.1} parent=11 // pred_fallthru
          _
        // Predicated region
        $region45: #{tpu_custom_call.1} parent=11 // pred_check
          %p495 = pneg %p337
        $region46: #{tpu_custom_call.1} parent=11 // pred_check_branch
          %497 = sbr.rel (%p495) target = $region48
        $region47: #{tpu_custom_call.1} parent=11 // pred_region
          %s499 = ssub.s32 2048, 2048
          %500 = vsyncadd [#allocation23], %s499
          %s501 = sshll.u32 [#allocation22], 4
          %s502 = int_to_ptr.vmem [resolvable:$true] %s501
          %507 = dma.hbm_to_vmem [thread:$0]  %s11, 2048, %s502, [#allocation23], 64, 64, 4
        $region48: #{tpu_custom_call.1} parent=11 // pred_fallthru
          _
        // Predicated region
        $region49: #{tpu_custom_call.1} parent=11 // pred_check
          %p508 = pneg %p358
        $region50: #{tpu_custom_call.1} parent=11 // pred_check_branch
          %510 = sbr.rel (%p508) target = $region52
        $region51: #{tpu_custom_call.1} parent=11 // pred_region
          %s512 = ssub.s32 16, 16
          %513 = vsyncadd [#allocation23], %s512
          %s515 = sshll.u32 [#allocation24], 4
          %s516 = int_to_ptr.vmem [resolvable:$true] %s515
          %518 = dma.hbm_to_vmem [thread:$0]  %s12, 16, %s516, [#allocation23]
        $region52: #{tpu_custom_call.1} parent=11 // pred_fallthru
          _
      $region12: #{tpu_custom_call.1} parent=5 // pred_fallthru
        _
      %p519 = scmp.lt.s32.totalorder %s33, 16
      // Predicated region
      $region53: #{tpu_custom_call.1} parent=5 // pred_check
        %p520 = pneg %p519
      $region54: #{tpu_custom_call.1} parent=5 // pred_check_branch
        %522 = sbr.rel (%p520) target = $region56
      $region55: #{tpu_custom_call.1} parent=5 // pred_region
        // Predicated region
        $region57: #{tpu_custom_call.1} parent=55 // pred_check
          %p523 = pneg %p74
        $region58: #{tpu_custom_call.1} parent=55 // pred_check_branch
          %525 = sbr.rel (%p523) target = $region60
        $region59: #{tpu_custom_call.1} parent=55 // pred_region
          %s526 = sand.u32 %s64, 1
          %s527 = scalar_lea.sflag [#allocation5], %s526
          %s528 = sand.u32 %s64, 1
          %s529 = smul.addr %s528, 64
          %s530 = scalar_lea.vmem [#allocation4], %s529
          %s531 = smul.u32 8, %s42
          %s533 = ssub.s32 1024, 1024
          %534 = vsyncadd %s527, %s533
          %s535 = smul.addr %s40, 32
          %s536 = sadd.s32 %s531, %s535
          %s537 = smul.addr %s536, 128
          %s538 = scalar_lea.hbm %s0, %s537
          %s539 = sshll.u32 %s530, 4
          %s540 = int_to_ptr.vmem [resolvable:$true] %s539
          %545 = dma.hbm_to_vmem [thread:$0]  %s538, 1024, %s540, %s527, 128, 128, 8
        $region60: #{tpu_custom_call.1} parent=55 // pred_fallthru
          _
        // Predicated region
        $region61: #{tpu_custom_call.1} parent=55 // pred_check
          %p546 = pneg %p108
        $region62: #{tpu_custom_call.1} parent=55 // pred_check_branch
          %548 = sbr.rel (%p546) target = $region64
        $region63: #{tpu_custom_call.1} parent=55 // pred_region
          %s549 = sand.u32 %s33, 1
          %s550 = scalar_lea.sflag [#allocation8], %s549
          %s551 = sand.u32 %s98, 1
          %s552 = smul.addr %s551, 64
          %s553 = scalar_lea.vmem [#allocation7], %s552
          %s554 = ssub.s32 %s42, 1
          %p555 = scmp.gt.s32.totalorder %s554, 0
          %s556 = scalar_select %p555, %s554, 0
          %s557 = smul.u32 8, %s556
          %s559 = ssub.s32 1024, 1024
          %560 = vsyncadd %s550, %s559
          %s561 = smul.addr %s40, 32
          %s562 = sadd.s32 %s557, %s561
          %s563 = smul.addr %s562, 128
          %s564 = scalar_lea.hbm %s1, %s563
          %s565 = sshll.u32 %s553, 4
          %s566 = int_to_ptr.vmem [resolvable:$true] %s565
          %571 = dma.hbm_to_vmem [thread:$0]  %s564, 1024, %s566, %s550, 128, 128, 8
        $region64: #{tpu_custom_call.1} parent=55 // pred_fallthru
          _
        // Predicated region
        $region65: #{tpu_custom_call.1} parent=55 // pred_check
          %p572 = pneg %p142
        $region66: #{tpu_custom_call.1} parent=55 // pred_check_branch
          %574 = sbr.rel (%p572) target = $region68
        $region67: #{tpu_custom_call.1} parent=55 // pred_region
          %s575 = sand.u32 %s33, 1
          %s576 = scalar_lea.sflag [#allocation8], %s575
          %s577 = sand.u32 %s132, 1
          %s578 = smul.addr %s577, 64
          %s579 = scalar_lea.vmem [#allocation9], %s578
          %s580 = sadd.s32 %s42, 1
          %p581 = scmp.lt.s32.totalorder %s580, 3
          %s582 = scalar_select %p581, %s580, 3
          %s583 = smul.u32 8, %s582
          %s585 = ssub.s32 1024, 1024
          %586 = vsyncadd %s576, %s585
          %s587 = smul.addr %s40, 32
          %s588 = sadd.s32 %s583, %s587
          %s589 = smul.addr %s588, 128
          %s590 = scalar_lea.hbm %s2, %s589
          %s591 = sshll.u32 %s579, 4
          %s592 = int_to_ptr.vmem [resolvable:$true] %s591
          %597 = dma.hbm_to_vmem [thread:$0]  %s590, 1024, %s592, %s576, 128, 128, 8
        $region68: #{tpu_custom_call.1} parent=55 // pred_fallthru
          _
      $region56: #{tpu_custom_call.1} parent=5 // pred_fallthru
        _
      %p598 = scmp.le.s32.totalorder 1, %s33
      %p599 = scmp.lt.s32.totalorder %s33, 17
      %p600 = pnand %p598, %p599
      %p601 = pneg %p600
      // Predicated region
      $region69: #{tpu_custom_call.1} parent=5 // pred_check
        _
      $region70: #{tpu_custom_call.1} parent=5 // pred_check_branch
        %603 = sbr.rel (%p600) target = $region72
      $region71: #{tpu_custom_call.1} parent=5 // pred_region
        %s604 = ssub.s32 %s33, 1
        %s605 = sand.u32 %s67, 1
        %s606 = scalar_lea.sflag [#allocation5], %s605
        %s607 = sand.u32 %s67, 1
        %s608 = smul.addr %s607, 64
        %s609 = scalar_lea.vmem [#allocation4], %s608
        // Predicated region
        $region73: #{tpu_custom_call.1} parent=71 // pred_check
          %p610 = pneg %p80
        $region74: #{tpu_custom_call.1} parent=71 // pred_check_branch
          %612 = sbr.rel (%p610) target = $region76
        $region75: #{tpu_custom_call.1} parent=71 // pred_region
          %613 = dma.done %s606, 1024
        $region76: #{tpu_custom_call.1} parent=71 // pred_fallthru
          _
        %s614 = sand.u32 %s38, 1
        %s615 = scalar_lea.sflag [#allocation8], %s614
        %s616 = sand.u32 %s101, 1
        %s617 = smul.addr %s616, 64
        %s618 = scalar_lea.vmem [#allocation7], %s617
        // Predicated region
        $region77: #{tpu_custom_call.1} parent=71 // pred_check
          %p619 = pneg %p114
        $region78: #{tpu_custom_call.1} parent=71 // pred_check_branch
          %621 = sbr.rel (%p619) target = $region80
        $region79: #{tpu_custom_call.1} parent=71 // pred_region
          %622 = dma.done %s615, 1024
        $region80: #{tpu_custom_call.1} parent=71 // pred_fallthru
          _
        %s623 = sand.u32 %s38, 1
        %s624 = scalar_lea.sflag [#allocation8], %s623
        %s625 = sand.u32 %s135, 1
        %s626 = smul.addr %s625, 64
        %s627 = scalar_lea.vmem [#allocation9], %s626
        // Predicated region
        $region81: #{tpu_custom_call.1} parent=71 // pred_check
          %p628 = pneg %p148
        $region82: #{tpu_custom_call.1} parent=71 // pred_check_branch
          %630 = sbr.rel (%p628) target = $region84
        $region83: #{tpu_custom_call.1} parent=71 // pred_region
          %631 = dma.done %s624, 1024
        $region84: #{tpu_custom_call.1} parent=71 // pred_fallthru
          _
        // Predicated region
        $region85: #{tpu_custom_call.1} parent=71 // pred_check
          %p632 = pneg %p169
        $region86: #{tpu_custom_call.1} parent=71 // pred_check_branch
          %634 = sbr.rel (%p632) target = $region88
        $region87: #{tpu_custom_call.1} parent=71 // pred_region
          %635 = dma.done [#allocation11], 128
        $region88: #{tpu_custom_call.1} parent=71 // pred_fallthru
          _
        // Predicated region
        $region89: #{tpu_custom_call.1} parent=71 // pred_check
          %p636 = pneg %p190
        $region90: #{tpu_custom_call.1} parent=71 // pred_check_branch
          %638 = sbr.rel (%p636) target = $region92
        $region91: #{tpu_custom_call.1} parent=71 // pred_region
          %639 = dma.done [#allocation11], 16
        $region92: #{tpu_custom_call.1} parent=71 // pred_fallthru
          _
        // Predicated region
        $region93: #{tpu_custom_call.1} parent=71 // pred_check
          %p640 = pneg %p211
        $region94: #{tpu_custom_call.1} parent=71 // pred_check_branch
          %642 = sbr.rel (%p640) target = $region96
        $region95: #{tpu_custom_call.1} parent=71 // pred_region
          %643 = dma.done [#allocation14], 16
        $region96: #{tpu_custom_call.1} parent=71 // pred_fallthru
          _
        // Predicated region
        $region97: #{tpu_custom_call.1} parent=71 // pred_check
          %p644 = pneg %p232
        $region98: #{tpu_custom_call.1} parent=71 // pred_check_branch
          %646 = sbr.rel (%p644) target = $region100
        $region99: #{tpu_custom_call.1} parent=71 // pred_region
          %647 = dma.done [#allocation14], 16
        $region100: #{tpu_custom_call.1} parent=71 // pred_fallthru
          _
        // Predicated region
        $region101: #{tpu_custom_call.1} parent=71 // pred_check
          %p648 = pneg %p253
        $region102: #{tpu_custom_call.1} parent=71 // pred_check_branch
          %650 = sbr.rel (%p648) target = $region104
        $region103: #{tpu_custom_call.1} parent=71 // pred_region
          %651 = dma.done [#allocation17], 2048
        $region104: #{tpu_custom_call.1} parent=71 // pred_fallthru
          _
        // Predicated region
        $region105: #{tpu_custom_call.1} parent=71 // pred_check
          %p652 = pneg %p274
        $region106: #{tpu_custom_call.1} parent=71 // pred_check_branch
          %654 = sbr.rel (%p652) target = $region108
        $region107: #{tpu_custom_call.1} parent=71 // pred_region
          %655 = dma.done [#allocation17], 32
        $region108: #{tpu_custom_call.1} parent=71 // pred_fallthru
          _
        // Predicated region
        $region109: #{tpu_custom_call.1} parent=71 // pred_check
          %p656 = pneg %p295
        $region110: #{tpu_custom_call.1} parent=71 // pred_check_branch
          %658 = sbr.rel (%p656) target = $region112
        $region111: #{tpu_custom_call.1} parent=71 // pred_region
          %659 = dma.done [#allocation20], 32
        $region112: #{tpu_custom_call.1} parent=71 // pred_fallthru
          _
        // Predicated region
        $region113: #{tpu_custom_call.1} parent=71 // pred_check
          %p660 = pneg %p316
        $region114: #{tpu_custom_call.1} parent=71 // pred_check_branch
          %662 = sbr.rel (%p660) target = $region116
        $region115: #{tpu_custom_call.1} parent=71 // pred_region
          %663 = dma.done [#allocation20], 32
        $region116: #{tpu_custom_call.1} parent=71 // pred_fallthru
          _
        // Predicated region
        $region117: #{tpu_custom_call.1} parent=71 // pred_check
          %p664 = pneg %p337
        $region118: #{tpu_custom_call.1} parent=71 // pred_check_branch
          %666 = sbr.rel (%p664) target = $region120
        $region119: #{tpu_custom_call.1} parent=71 // pred_region
          %667 = dma.done [#allocation23], 2048
        $region120: #{tpu_custom_call.1} parent=71 // pred_fallthru
          _
        // Predicated region
        $region121: #{tpu_custom_call.1} parent=71 // pred_check
          %p668 = pneg %p358
        $region122: #{tpu_custom_call.1} parent=71 // pred_check_branch
          %670 = sbr.rel (%p668) target = $region124
        $region123: #{tpu_custom_call.1} parent=71 // pred_region
          %671 = dma.done [#allocation23], 16
        $region124: #{tpu_custom_call.1} parent=71 // pred_fallthru
          _
        %s672 = sand.u32 %s67, 1
        %s673 = scalar_lea.sflag [#allocation5], %s672
        %s674 = sand.u32 %s67, 1
        %s675 = smul.addr %s674, 64
        %s676 = scalar_lea.vmem [#allocation4], %s675
        %p677 = pneg %p80
        %p678 = pneg %p77
        %s679 = sand.u32 %s38, 1
        %s680 = scalar_lea.sflag [#allocation8], %s679
        %s681 = sand.u32 %s101, 1
        %s682 = smul.addr %s681, 64
        %s683 = scalar_lea.vmem [#allocation7], %s682
        %p684 = pneg %p114
        %p685 = pneg %p111
        %s686 = sand.u32 %s38, 1
        %s687 = scalar_lea.sflag [#allocation8], %s686
        %s688 = sand.u32 %s135, 1
        %s689 = smul.addr %s688, 64
        %s690 = scalar_lea.vmem [#allocation9], %s689
        %p691 = pneg %p148
        %p692 = pneg %p145
        %p693 = pneg %p169
        %p694 = pneg %p166
        %p695 = pneg %p190
        %p696 = pneg %p187
        %p697 = pneg %p211
        %p698 = pneg %p208
        %p699 = pneg %p232
        %p700 = pneg %p229
        %p701 = pneg %p253
        %p702 = pneg %p250
        %p703 = pneg %p274
        %p704 = pneg %p271
        %p705 = pneg %p295
        %p706 = pneg %p292
        %p707 = pneg %p316
        %p708 = pneg %p313
        %p709 = pneg %p337
        %p710 = pneg %p334
        %p711 = pneg %p358
        %p712 = pneg %p355
        %p713 = pneg %p390
        %p714 = pneg %p387
        %s715 = sand.u32 %s377, 1
        %s716 = scalar_lea.sflag [#allocation6], %s715
        %s717 = sand.u32 %s377, 1
        %s718 = smul.addr %s717, 64
        %s719 = scalar_lea.vmem [#allocation25], %s718
        %s720 = smul.u32 8, %s45
        %s721 = ssub.s32 %s45, 1
        %p722 = scmp.gt.s32.totalorder %s721, 0
        %s723 = scalar_select %p722, %s721, 0
        %s724 = smul.u32 8, %s723
        %s725 = sadd.s32 %s45, 1
        %p726 = scmp.lt.s32.totalorder %s725, 3
        %s727 = scalar_select %p726, %s725, 3
        %s728 = smul.u32 8, %s727
        %p729 = scmp.eq.s32.totalorder %s44, 1
        %s730 = scalar_select %p729, %s45, 0
        %s731 = smul.u32 8, %s730
        %p733 = scmp.gt.s32.totalorder %s45, 0
        %s734 = scalar_select %p733, 1, 0
        %s735 = scvt.s32.f32 %s734
        %p736 = scmp.lt.s32.totalorder %s45, 3
        %s737 = scalar_select %p736, 1, 0
        %s738 = scvt.s32.f32 %s737
        %v739 = vld [vmem:[%s618 + $0x3d] sm:$0x7]
        %v740 = vstv %s735
        %v741 = vmul.f32 %v739, %v740
        %742 = vst [vmem:[#allocation3] sm:$0x7] %v741
        %v743 = vld [vmem:[%s627] sm:$0x7]
        %v744 = vstv %s738
        %v745 = vmul.f32 %v743, %v744
        %746 = vst [vmem:[#allocation3 + $0x43] sm:$0x7] %v745
        %v747 = vld [vmem:[%s609] sm:$0xff]
        %v748 = vld [vmem:[%s609 + $0x8] sm:$0xff]
        %v749 = vld [vmem:[%s609 + $0x10] sm:$0xff]
        %v750 = vld [vmem:[%s609 + $0x18] sm:$0xff]
        %v751 = vld [vmem:[%s609 + $0x20] sm:$0xff]
        %v752 = vld [vmem:[%s609 + $0x28] sm:$0xff]
        %v753 = vld [vmem:[%s609 + $0x30] sm:$0xff]
        %v754 = vld [vmem:[%s609 + $0x38] sm:$0xff]
        %755 = vst [vmem:[#allocation3 + $0x3] sm:$0xff] %v747
        %756 = vst [vmem:[#allocation3 + $0xb] sm:$0xff] %v748
        %757 = vst [vmem:[#allocation3 + $0x13] sm:$0xff] %v749
        %758 = vst [vmem:[#allocation3 + $0x1b] sm:$0xff] %v750
        %759 = vst [vmem:[#allocation3 + $0x23] sm:$0xff] %v751
        %760 = vst [vmem:[#allocation3 + $0x2b] sm:$0xff] %v752
        %761 = vst [vmem:[#allocation3 + $0x33] sm:$0xff] %v753
        %762 = vst [vmem:[#allocation3 + $0x3b] sm:$0xff] %v754
        %v763 = vld [vmem:[#allocation10] sm:$0x7f]
        %v764 = vld [vmem:[#allocation3] sm:$0xff]
        %v765 = vld [vmem:[#allocation3 + $0x8] sm:$0xff]
        %v766 = vld [vmem:[#allocation3 + $0x10] sm:$0xff]
        %v767 = vld [vmem:[#allocation3 + $0x18] sm:$0xff]
        %v768 = vld [vmem:[#allocation3 + $0x20] sm:$0xff]
        %v769 = vld [vmem:[#allocation3 + $0x28] sm:$0xff]
        %v770 = vld [vmem:[#allocation3 + $0x30] sm:$0xff]
        %v771 = vld [vmem:[#allocation3 + $0x38] sm:$0xff]
        %v772 = vlaneseq
        %v773 = vshrl.u32 %v772, 7
        %v774 = vsub.s32 0, %v773
        %v775 = vrot.slane %v763, %v774
        %v776 = vmul.f32 %v764, %v775
        %v777 = vmul.f32 %v765, %v775
        %v778 = vmul.f32 %v766, %v775
        %v779 = vmul.f32 %v767, %v775
        %v780 = vmul.f32 %v768, %v775
        %v781 = vmul.f32 %v769, %v775
        %v782 = vmul.f32 %v770, %v775
        %v783 = vmul.f32 %v771, %v775
        %v784 = vld [vmem:[#allocation3 + $0x1] sm:$0xff]
        %v785 = vld [vmem:[#allocation3 + $0x9] sm:$0xff]
        %v786 = vld [vmem:[#allocation3 + $0x11] sm:$0xff]
        %v787 = vld [vmem:[#allocation3 + $0x19] sm:$0xff]
        %v788 = vld [vmem:[#allocation3 + $0x21] sm:$0xff]
        %v789 = vld [vmem:[#allocation3 + $0x29] sm:$0xff]
        %v790 = vld [vmem:[#allocation3 + $0x31] sm:$0xff]
        %v791 = vld [vmem:[#allocation3 + $0x39] sm:$0xff]
        %v792 = vlaneseq
        %v793 = vshrl.u32 %v792, 7
        %v794 = vsub.s32 1, %v793
        %v795 = vrot.slane %v763, %v794
        %v796 = vmul.f32 %v784, %v795
        %v797 = vmul.f32 %v785, %v795
        %v798 = vmul.f32 %v786, %v795
        %v799 = vmul.f32 %v787, %v795
        %v800 = vmul.f32 %v788, %v795
        %v801 = vmul.f32 %v789, %v795
        %v802 = vmul.f32 %v790, %v795
        %v803 = vmul.f32 %v791, %v795
        %v804 = vadd.f32 %v776, %v796
        %v805 = vadd.f32 %v777, %v797
        %v806 = vadd.f32 %v778, %v798
        %v807 = vadd.f32 %v779, %v799
        %v808 = vadd.f32 %v780, %v800
        %v809 = vadd.f32 %v781, %v801
        %v810 = vadd.f32 %v782, %v802
        %v811 = vadd.f32 %v783, %v803
        %v812 = vld [vmem:[#allocation3 + $0x2] sm:$0xff]
        %v813 = vld [vmem:[#allocation3 + $0xa] sm:$0xff]
        %v814 = vld [vmem:[#allocation3 + $0x12] sm:$0xff]
        %v815 = vld [vmem:[#allocation3 + $0x1a] sm:$0xff]
        %v816 = vld [vmem:[#allocation3 + $0x22] sm:$0xff]
        %v817 = vld [vmem:[#allocation3 + $0x2a] sm:$0xff]
        %v818 = vld [vmem:[#allocation3 + $0x32] sm:$0xff]
        %v819 = vld [vmem:[#allocation3 + $0x3a] sm:$0xff]
        %v820 = vlaneseq
        %v821 = vshrl.u32 %v820, 7
        %v822 = vsub.s32 2, %v821
        %v823 = vrot.slane %v763, %v822
        %v824 = vmul.f32 %v812, %v823
        %v825 = vmul.f32 %v813, %v823
        %v826 = vmul.f32 %v814, %v823
        %v827 = vmul.f32 %v815, %v823
        %v828 = vmul.f32 %v816, %v823
        %v829 = vmul.f32 %v817, %v823
        %v830 = vmul.f32 %v818, %v823
        %v831 = vmul.f32 %v819, %v823
        %v832 = vadd.f32 %v804, %v824
        %v833 = vadd.f32 %v805, %v825
        %v834 = vadd.f32 %v806, %v826
        %v835 = vadd.f32 %v807, %v827
        %v836 = vadd.f32 %v808, %v828
        %v837 = vadd.f32 %v809, %v829
        %v838 = vadd.f32 %v810, %v830
        %v839 = vadd.f32 %v811, %v831
        %v840 = vld [vmem:[#allocation3 + $0x3] sm:$0xff]
        %v841 = vld [vmem:[#allocation3 + $0xb] sm:$0xff]
        %v842 = vld [vmem:[#allocation3 + $0x13] sm:$0xff]
        %v843 = vld [vmem:[#allocation3 + $0x1b] sm:$0xff]
        %v844 = vld [vmem:[#allocation3 + $0x23] sm:$0xff]
        %v845 = vld [vmem:[#allocation3 + $0x2b] sm:$0xff]
        %v846 = vld [vmem:[#allocation3 + $0x33] sm:$0xff]
        %v847 = vld [vmem:[#allocation3 + $0x3b] sm:$0xff]
        %v848 = vlaneseq
        %v849 = vshrl.u32 %v848, 7
        %v850 = vsub.s32 3, %v849
        %v851 = vrot.slane %v763, %v850
        %v852 = vmul.f32 %v840, %v851
        %v853 = vmul.f32 %v841, %v851
        %v854 = vmul.f32 %v842, %v851
        %v855 = vmul.f32 %v843, %v851
        %v856 = vmul.f32 %v844, %v851
        %v857 = vmul.f32 %v845, %v851
        %v858 = vmul.f32 %v846, %v851
        %v859 = vmul.f32 %v847, %v851
        %v860 = vadd.f32 %v832, %v852
        %v861 = vadd.f32 %v833, %v853
        %v862 = vadd.f32 %v834, %v854
        %v863 = vadd.f32 %v835, %v855
        %v864 = vadd.f32 %v836, %v856
        %v865 = vadd.f32 %v837, %v857
        %v866 = vadd.f32 %v838, %v858
        %v867 = vadd.f32 %v839, %v859
        %v868 = vld [vmem:[#allocation3 + $0x4] sm:$0xff]
        %v869 = vld [vmem:[#allocation3 + $0xc] sm:$0xff]
        %v870 = vld [vmem:[#allocation3 + $0x14] sm:$0xff]
        %v871 = vld [vmem:[#allocation3 + $0x1c] sm:$0xff]
        %v872 = vld [vmem:[#allocation3 + $0x24] sm:$0xff]
        %v873 = vld [vmem:[#allocation3 + $0x2c] sm:$0xff]
        %v874 = vld [vmem:[#allocation3 + $0x34] sm:$0xff]
        %v875 = vld [vmem:[#allocation3 + $0x3c] sm:$0xff]
        %v876 = vlaneseq
        %v877 = vshrl.u32 %v876, 7
        %v878 = vsub.s32 4, %v877
        %v879 = vrot.slane %v763, %v878
        %v880 = vmul.f32 %v868, %v879
        %v881 = vmul.f32 %v869, %v879
        %v882 = vmul.f32 %v870, %v879
        %v883 = vmul.f32 %v871, %v879
        %v884 = vmul.f32 %v872, %v879
        %v885 = vmul.f32 %v873, %v879
        %v886 = vmul.f32 %v874, %v879
        %v887 = vmul.f32 %v875, %v879
        %v888 = vadd.f32 %v860, %v880
        %v889 = vadd.f32 %v861, %v881
        %v890 = vadd.f32 %v862, %v882
        %v891 = vadd.f32 %v863, %v883
        %v892 = vadd.f32 %v864, %v884
        %v893 = vadd.f32 %v865, %v885
        %v894 = vadd.f32 %v866, %v886
        %v895 = vadd.f32 %v867, %v887
        %v896 = vld [vmem:[#allocation3 + $0x5] sm:$0xff]
        %v897 = vld [vmem:[#allocation3 + $0xd] sm:$0xff]
        %v898 = vld [vmem:[#allocation3 + $0x15] sm:$0xff]
        %v899 = vld [vmem:[#allocation3 + $0x1d] sm:$0xff]
        %v900 = vld [vmem:[#allocation3 + $0x25] sm:$0xff]
        %v901 = vld [vmem:[#allocation3 + $0x2d] sm:$0xff]
        %v902 = vld [vmem:[#allocation3 + $0x35] sm:$0xff]
        %v903 = vld [vmem:[#allocation3 + $0x3d] sm:$0xff]
        %v904 = vlaneseq
        %v905 = vshrl.u32 %v904, 7
        %v906 = vsub.s32 5, %v905
        %v907 = vrot.slane %v763, %v906
        %v908 = vmul.f32 %v896, %v907
        %v909 = vmul.f32 %v897, %v907
        %v910 = vmul.f32 %v898, %v907
        %v911 = vmul.f32 %v899, %v907
        %v912 = vmul.f32 %v900, %v907
        %v913 = vmul.f32 %v901, %v907
        %v914 = vmul.f32 %v902, %v907
        %v915 = vmul.f32 %v903, %v907
        %v916 = vadd.f32 %v888, %v908
        %v917 = vadd.f32 %v889, %v909
        %v918 = vadd.f32 %v890, %v910
        %v919 = vadd.f32 %v891, %v911
        %v920 = vadd.f32 %v892, %v912
        %v921 = vadd.f32 %v893, %v913
        %v922 = vadd.f32 %v894, %v914
        %v923 = vadd.f32 %v895, %v915
        %v924 = vld [vmem:[#allocation3 + $0x6] sm:$0xff]
        %v925 = vld [vmem:[#allocation3 + $0xe] sm:$0xff]
        %v926 = vld [vmem:[#allocation3 + $0x16] sm:$0xff]
        %v927 = vld [vmem:[#allocation3 + $0x1e] sm:$0xff]
        %v928 = vld [vmem:[#allocation3 + $0x26] sm:$0xff]
        %v929 = vld [vmem:[#allocation3 + $0x2e] sm:$0xff]
        %v930 = vld [vmem:[#allocation3 + $0x36] sm:$0xff]
        %v931 = vld [vmem:[#allocation3 + $0x3e] sm:$0xff]
        %v932 = vlaneseq
        %v933 = vshrl.u32 %v932, 7
        %v934 = vsub.s32 6, %v933
        %v935 = vrot.slane %v763, %v934
        %v936 = vmul.f32 %v924, %v935
        %v937 = vmul.f32 %v925, %v935
        %v938 = vmul.f32 %v926, %v935
        %v939 = vmul.f32 %v927, %v935
        %v940 = vmul.f32 %v928, %v935
        %v941 = vmul.f32 %v929, %v935
        %v942 = vmul.f32 %v930, %v935
        %v943 = vmul.f32 %v931, %v935
        %v944 = vadd.f32 %v916, %v936
        %v945 = vadd.f32 %v917, %v937
        %v946 = vadd.f32 %v918, %v938
        %v947 = vadd.f32 %v919, %v939
        %v948 = vadd.f32 %v920, %v940
        %v949 = vadd.f32 %v921, %v941
        %v950 = vadd.f32 %v922, %v942
        %v951 = vadd.f32 %v923, %v943
        %v952 = vld [vmem:[#allocation12] sm:$0x1]
        %v954 = vlaneseq
        %v955 = vshrl.u32 %v954, 7
        %v956 = vsub.s32 0, %v955
        %v957 = vrot.slane %v952, %v956
        %v959 = vadd.f32 %v944, %v957
        %v960 = vadd.f32 %v945, %v957
        %v961 = vadd.f32 %v946, %v957
        %v962 = vadd.f32 %v947, %v957
        %v963 = vadd.f32 %v948, %v957
        %v964 = vadd.f32 %v949, %v957
        %v965 = vadd.f32 %v950, %v957
        %v966 = vadd.f32 %v951, %v957
        %967 = vadd.xlane.f32.xlu0 %v959
        %v968 = vpop.xlane.xlu0 %967
        %969 = vadd.xlane.f32.xlu0 %v960
        %v970 = vpop.xlane.xlu0 %969
        %971 = vadd.xlane.f32.xlu0 %v961
        %v972 = vpop.xlane.xlu0 %971
        %973 = vadd.xlane.f32.xlu0 %v962
        %v974 = vpop.xlane.xlu0 %973
        %975 = vadd.xlane.f32.xlu0 %v963
        %v976 = vpop.xlane.xlu0 %975
        %977 = vadd.xlane.f32.xlu0 %v964
        %v978 = vpop.xlane.xlu0 %977
        %979 = vadd.xlane.f32.xlu0 %v965
        %v980 = vpop.xlane.xlu0 %979
        %981 = vadd.xlane.f32.xlu0 %v966
        %v982 = vpop.xlane.xlu0 %981
        %v983 = vrcp.pop 128.0
        %v984 = vmul.f32 %v968, %v983
        %v985 = vmul.f32 %v970, %v983
        %v986 = vmul.f32 %v972, %v983
        %v987 = vmul.f32 %v974, %v983
        %v988 = vmul.f32 %v976, %v983
        %v989 = vmul.f32 %v978, %v983
        %v990 = vmul.f32 %v980, %v983
        %v991 = vmul.f32 %v982, %v983
        %v992 = vsub.f32 %v959, %v984
        %v993 = vsub.f32 %v960, %v985
        %v994 = vsub.f32 %v961, %v986
        %v995 = vsub.f32 %v962, %v987
        %v996 = vsub.f32 %v963, %v988
        %v997 = vsub.f32 %v964, %v989
        %v998 = vsub.f32 %v965, %v990
        %v999 = vsub.f32 %v966, %v991
        %v1000 = vmul.f32 %v992, %v992
        %v1001 = vmul.f32 %v993, %v993
        %v1002 = vmul.f32 %v994, %v994
        %v1003 = vmul.f32 %v995, %v995
        %v1004 = vmul.f32 %v996, %v996
        %v1005 = vmul.f32 %v997, %v997
        %v1006 = vmul.f32 %v998, %v998
        %v1007 = vmul.f32 %v999, %v999
        %1008 = vadd.xlane.f32.xlu0 %v1000
        %v1009 = vpop.xlane.xlu0 %1008
        %1010 = vadd.xlane.f32.xlu0 %v1001
        %v1011 = vpop.xlane.xlu0 %1010
        %1012 = vadd.xlane.f32.xlu0 %v1002
        %v1013 = vpop.xlane.xlu0 %1012
        %1014 = vadd.xlane.f32.xlu0 %v1003
        %v1015 = vpop.xlane.xlu0 %1014
        %1016 = vadd.xlane.f32.xlu0 %v1004
        %v1017 = vpop.xlane.xlu0 %1016
        %1018 = vadd.xlane.f32.xlu0 %v1005
        %v1019 = vpop.xlane.xlu0 %1018
        %1020 = vadd.xlane.f32.xlu0 %v1006
        %v1021 = vpop.xlane.xlu0 %1020
        %1022 = vadd.xlane.f32.xlu0 %v1007
        %v1023 = vpop.xlane.xlu0 %1022
        %v1024 = vmul.f32 %v1009, %v983
        %v1025 = vmul.f32 %v1011, %v983
        %v1026 = vmul.f32 %v1013, %v983
        %v1027 = vmul.f32 %v1015, %v983
        %v1028 = vmul.f32 %v1017, %v983
        %v1029 = vmul.f32 %v1019, %v983
        %v1030 = vmul.f32 %v1021, %v983
        %v1031 = vmul.f32 %v1023, %v983
        %v1032 = vadd.f32 %v1024, 1e-06
        %v1033 = vadd.f32 %v1025, 1e-06
        %v1034 = vadd.f32 %v1026, 1e-06
        %v1035 = vadd.f32 %v1027, 1e-06
        %v1036 = vadd.f32 %v1028, 1e-06
        %v1037 = vadd.f32 %v1029, 1e-06
        %v1038 = vadd.f32 %v1030, 1e-06
        %v1039 = vadd.f32 %v1031, 1e-06
        %v1040 = vrsqrt.pop %v1032
        %v1041 = vrsqrt.pop %v1033
        %v1042 = vrsqrt.pop %v1034
        %v1043 = vrsqrt.pop %v1035
        %v1044 = vrsqrt.pop %v1036
        %v1045 = vrsqrt.pop %v1037
        %v1046 = vrsqrt.pop %v1038
        %v1047 = vrsqrt.pop %v1039
        %v1048 = vmul.f32 %v992, %v1040
        %v1049 = vmul.f32 %v993, %v1041
        %v1050 = vmul.f32 %v994, %v1042
        %v1051 = vmul.f32 %v995, %v1043
        %v1052 = vmul.f32 %v996, %v1044
        %v1053 = vmul.f32 %v997, %v1045
        %v1054 = vmul.f32 %v998, %v1046
        %v1055 = vmul.f32 %v999, %v1047
        %v1056 = vld [vmem:[#allocation13] sm:$0x1]
        %v1058 = vlaneseq
        %v1059 = vshrl.u32 %v1058, 7
        %v1060 = vsub.s32 0, %v1059
        %v1061 = vrot.slane %v1056, %v1060
        %v1063 = vmul.f32 %v1048, %v1061
        %v1064 = vmul.f32 %v1049, %v1061
        %v1065 = vmul.f32 %v1050, %v1061
        %v1066 = vmul.f32 %v1051, %v1061
        %v1067 = vmul.f32 %v1052, %v1061
        %v1068 = vmul.f32 %v1053, %v1061
        %v1069 = vmul.f32 %v1054, %v1061
        %v1070 = vmul.f32 %v1055, %v1061
        %v1071 = vld [vmem:[#allocation15] sm:$0x1]
        %v1073 = vlaneseq
        %v1074 = vshrl.u32 %v1073, 7
        %v1075 = vsub.s32 0, %v1074
        %v1076 = vrot.slane %v1071, %v1075
        %v1078 = vadd.f32 %v1063, %v1076
        %v1079 = vadd.f32 %v1064, %v1076
        %v1080 = vadd.f32 %v1065, %v1076
        %v1081 = vadd.f32 %v1066, %v1076
        %v1082 = vadd.f32 %v1067, %v1076
        %v1083 = vadd.f32 %v1068, %v1076
        %v1084 = vadd.f32 %v1069, %v1076
        %v1085 = vadd.f32 %v1070, %v1076
        %v1086 = vpack.c.bf16 %v1079, %v1078
        %v1087 = vpack.c.bf16 %v1081, %v1080
        %v1088 = vpack.c.bf16 %v1083, %v1082
        %v1089 = vpack.c.bf16 %v1085, %v1084
        %v1090 = vld [vmem:[#allocation16] sm:$0xff]
        %v1091 = vld [vmem:[#allocation16 + $0x8] sm:$0xff]
        %v1092 = vld [vmem:[#allocation16 + $0x10] sm:$0xff]
        %v1093 = vld [vmem:[#allocation16 + $0x18] sm:$0xff]
        %v1094 = vld [vmem:[#allocation16 + $0x20] sm:$0xff]
        %v1095 = vld [vmem:[#allocation16 + $0x28] sm:$0xff]
        %v1096 = vld [vmem:[#allocation16 + $0x30] sm:$0xff]
        %v1097 = vld [vmem:[#allocation16 + $0x38] sm:$0xff]
        %v1098 = vld [vmem:[#allocation16 + $0x40] sm:$0xff]
        %v1099 = vld [vmem:[#allocation16 + $0x48] sm:$0xff]
        %v1100 = vld [vmem:[#allocation16 + $0x50] sm:$0xff]
        %v1101 = vld [vmem:[#allocation16 + $0x58] sm:$0xff]
        %v1102 = vld [vmem:[#allocation16 + $0x60] sm:$0xff]
        %v1103 = vld [vmem:[#allocation16 + $0x68] sm:$0xff]
        %v1104 = vld [vmem:[#allocation16 + $0x70] sm:$0xff]
        %v1105 = vld [vmem:[#allocation16 + $0x78] sm:$0xff]
        %v1106 = vld [vmem:[#allocation18] sm:$0x3]
        %v1108 = vlaneseq
        %v1109 = vshrl.u32 %v1108, 7
        %v1110 = vsub.s32 0, %v1109
        %v1111 = vrot.slane %v1106, %v1110
        %v1112 = vlaneseq
        %v1113 = vshrl.u32 %v1112, 7
        %v1114 = vsub.s32 1, %v1113
        %v1115 = vrot.slane %v1106, %v1114
        %v1134 = vunpack.c.l.b16 %v1090
        %v1135 = vunpack.c.h.b16 %v1090
        %v1136 = vunpack.c.l.b16 %v1091
        %v1137 = vunpack.c.h.b16 %v1091
        %v1138 = vunpack.c.l.b16 %v1092
        %v1139 = vunpack.c.h.b16 %v1092
        %v1140 = vunpack.c.l.b16 %v1093
        %v1141 = vunpack.c.h.b16 %v1093
        %v1142 = vunpack.c.l.b16 %v1094
        %v1143 = vunpack.c.h.b16 %v1094
        %v1144 = vunpack.c.l.b16 %v1095
        %v1145 = vunpack.c.h.b16 %v1095
        %v1146 = vunpack.c.l.b16 %v1096
        %v1147 = vunpack.c.h.b16 %v1096
        %v1148 = vunpack.c.l.b16 %v1097
        %v1149 = vunpack.c.h.b16 %v1097
        %v1150 = vunpack.c.l.b16 %v1098
        %v1151 = vunpack.c.h.b16 %v1098
        %v1152 = vunpack.c.l.b16 %v1099
        %v1153 = vunpack.c.h.b16 %v1099
        %v1154 = vunpack.c.l.b16 %v1100
        %v1155 = vunpack.c.h.b16 %v1100
        %v1156 = vunpack.c.l.b16 %v1101
        %v1157 = vunpack.c.h.b16 %v1101
        %v1158 = vunpack.c.l.b16 %v1102
        %v1159 = vunpack.c.h.b16 %v1102
        %v1160 = vunpack.c.l.b16 %v1103
        %v1161 = vunpack.c.h.b16 %v1103
        %v1162 = vunpack.c.l.b16 %v1104
        %v1163 = vunpack.c.h.b16 %v1104
        %v1164 = vunpack.c.l.b16 %v1105
        %v1165 = vunpack.c.h.b16 %v1105
        %v1166 = vpack.c.b16 %v1136, %v1134
        %v1167 = vpack.c.b16 %v1137, %v1135
        %v1168 = vpack.c.b16 %v1140, %v1138
        %v1169 = vpack.c.b16 %v1141, %v1139
        %v1170 = vpack.c.b16 %v1144, %v1142
        %v1171 = vpack.c.b16 %v1145, %v1143
        %v1172 = vpack.c.b16 %v1148, %v1146
        %v1173 = vpack.c.b16 %v1149, %v1147
        %v1174 = vpack.c.b16 %v1152, %v1150
        %v1175 = vpack.c.b16 %v1153, %v1151
        %v1176 = vpack.c.b16 %v1156, %v1154
        %v1177 = vpack.c.b16 %v1157, %v1155
        %v1178 = vpack.c.b16 %v1160, %v1158
        %v1179 = vpack.c.b16 %v1161, %v1159
        %v1180 = vpack.c.b16 %v1164, %v1162
        %v1181 = vpack.c.b16 %v1165, %v1163
        %1198 = vmatprep.subr.bf16.mxu0 %v1167
        %1199 = vmatpush1.bf16.msra.mxu0 %v1166
        %1200 = vmatprep.subr.bf16.mxu0 %v1169
        %1201 = vmatpush1.bf16.msra.mxu0 %v1168
        %1202 = vmatprep.subr.bf16.mxu0 %v1171
        %1203 = vmatpush1.bf16.msra.mxu0 %v1170
        %1204 = vmatprep.subr.bf16.mxu0 %v1173
        %1205 = vmatpush1.bf16.msra.mxu0 %v1172
        %1206 = vmatprep.subr.bf16.mxu0 %v1175
        %1207 = vmatpush1.bf16.msra.mxu0 %v1174
        %1208 = vmatprep.subr.bf16.mxu0 %v1177
        %1209 = vmatpush1.bf16.msra.mxu0 %v1176
        %1210 = vmatprep.subr.bf16.mxu0 %v1179
        %1211 = vmatpush1.bf16.msra.mxu0 %v1178
        %1212 = vmatprep.subr.bf16.mxu0 %v1181
        %1213 = vmatpush1.bf16.msra.mxu0 %v1180
        %1214 = vmatprep.subr.bf16.mxu0 0
        %1215 = vmatpush1.bf16.msra.mxu0 0
        %1216 = vmatprep.subr.bf16.mxu0 0
        %1217 = vmatpush1.bf16.msra.mxu0 0
        %1218 = vmatprep.subr.bf16.mxu0 0
        %1219 = vmatpush1.bf16.msra.mxu0 0
        %1220 = vmatprep.subr.bf16.mxu0 0
        %1221 = vmatpush1.bf16.msra.mxu0 0
        %1222 = vmatprep.subr.bf16.mxu0 0
        %1223 = vmatpush1.bf16.msra.mxu0 0
        %1224 = vmatprep.subr.bf16.mxu0 0
        %1225 = vmatpush1.bf16.msra.mxu0 0
        %1226 = vmatprep.subr.bf16.mxu0 0
        %1227 = vmatpush1.bf16.msra.mxu0 0
        %1228 = vmatprep.subr.bf16.mxu0 0
        %1229 = vmatpush1.bf16.msra.mxu0 0
        %1230 = vmatprep.mubr.bf16.mxu0 0
        %1231 = vmatmul.mubr.bf16.gmra.mrb[0].mxu0 %v1086
        %v1232 = vpop.f32.mrb[0].mxu0
        %v1233 = vadd.f32 %v1111, %v1232
        %v1234 = vpop.f32.mrb[0].mxu0
        %v1235 = vadd.f32 %v1115, %v1234
        %v1236 = vpop.f32.mrb[0].mxu0
        %v1237 = vadd.f32 %v1111, %v1236
        %v1238 = vpop.f32.mrb[0].mxu0
        %v1239 = vadd.f32 %v1115, %v1238
        %1240 = vmatprep.mubr.bf16.mxu0 0
        %1241 = vmatmul.mubr.bf16.gmra.mrb[0].mxu0 %v1087
        %v1242 = vpop.f32.mrb[0].mxu0
        %v1243 = vadd.f32 %v1111, %v1242
        %v1244 = vpop.f32.mrb[0].mxu0
        %v1245 = vadd.f32 %v1115, %v1244
        %v1246 = vpop.f32.mrb[0].mxu0
        %v1247 = vadd.f32 %v1111, %v1246
        %v1248 = vpop.f32.mrb[0].mxu0
        %v1249 = vadd.f32 %v1115, %v1248
        %1250 = vmatprep.mubr.bf16.mxu0 0
        %1251 = vmatmul.mubr.bf16.gmra.mrb[0].mxu0 %v1088
        %v1252 = vpop.f32.mrb[0].mxu0
        %v1253 = vadd.f32 %v1111, %v1252
        %v1254 = vpop.f32.mrb[0].mxu0
        %v1255 = vadd.f32 %v1115, %v1254
        %v1256 = vpop.f32.mrb[0].mxu0
        %v1257 = vadd.f32 %v1111, %v1256
        %v1258 = vpop.f32.mrb[0].mxu0
        %v1259 = vadd.f32 %v1115, %v1258
        %1260 = vmatprep.mubr.bf16.mxu0 0
        %1261 = vmatmul.mubr.bf16.gmra.mrb[0].mxu0 %v1089
        %v1262 = vpop.f32.mrb[0].mxu0
        %v1263 = vadd.f32 %v1111, %v1262
        %v1264 = vpop.f32.mrb[0].mxu0
        %v1265 = vadd.f32 %v1115, %v1264
        %v1266 = vpop.f32.mrb[0].mxu0
        %v1267 = vadd.f32 %v1111, %v1266
        %v1268 = vpop.f32.mrb[0].mxu0
        %v1269 = vadd.f32 %v1115, %v1268
        %1270 = vdwg.mxu0
        %v1271 = vmul.f32 %v1233, 0.70710677
        %v1272 = vmul.f32 %v1235, 0.70710677
        %v1273 = vmul.f32 %v1237, 0.70710677
        %v1274 = vmul.f32 %v1239, 0.70710677
        %v1275 = vmul.f32 %v1243, 0.70710677
        %v1276 = vmul.f32 %v1245, 0.70710677
        %v1277 = vmul.f32 %v1247, 0.70710677
        %v1278 = vmul.f32 %v1249, 0.70710677
        %v1279 = vmul.f32 %v1253, 0.70710677
        %v1280 = vmul.f32 %v1255, 0.70710677
        %v1281 = vmul.f32 %v1257, 0.70710677
        %v1282 = vmul.f32 %v1259, 0.70710677
        %v1283 = vmul.f32 %v1263, 0.70710677
        %v1284 = vmul.f32 %v1265, 0.70710677
        %v1285 = vmul.f32 %v1267, 0.70710677
        %v1286 = vmul.f32 %v1269, 0.70710677
        %v1287 = vand.u32 2147483647, %v1271
        %v1288 = vand.u32 2147483647, %v1272
        %v1289 = vand.u32 2147483647, %v1273
        %v1290 = vand.u32 2147483647, %v1274
        %v1291 = vand.u32 2147483647, %v1275
        %v1292 = vand.u32 2147483647, %v1276
        %v1293 = vand.u32 2147483647, %v1277
        %v1294 = vand.u32 2147483647, %v1278
        %v1295 = vand.u32 2147483647, %v1279
        %v1296 = vand.u32 2147483647, %v1280
        %v1297 = vand.u32 2147483647, %v1281
        %v1298 = vand.u32 2147483647, %v1282
        %v1299 = vand.u32 2147483647, %v1283
        %v1300 = vand.u32 2147483647, %v1284
        %v1301 = vand.u32 2147483647, %v1285
        %v1302 = vand.u32 2147483647, %v1286
        %v1303 = vmul.f32 %v1287, 0.3275911
        %v1304 = vmul.f32 %v1288, 0.3275911
        %v1305 = vmul.f32 %v1289, 0.3275911
        %v1306 = vmul.f32 %v1290, 0.3275911
        %v1307 = vmul.f32 %v1291, 0.3275911
        %v1308 = vmul.f32 %v1292, 0.3275911
        %v1309 = vmul.f32 %v1293, 0.3275911
        %v1310 = vmul.f32 %v1294, 0.3275911
        %v1311 = vmul.f32 %v1295, 0.3275911
        %v1312 = vmul.f32 %v1296, 0.3275911
        %v1313 = vmul.f32 %v1297, 0.3275911
        %v1314 = vmul.f32 %v1298, 0.3275911
        %v1315 = vmul.f32 %v1299, 0.3275911
        %v1316 = vmul.f32 %v1300, 0.3275911
        %v1317 = vmul.f32 %v1301, 0.3275911
        %v1318 = vmul.f32 %v1302, 0.3275911
        %v1319 = vadd.f32 %v1303, 1.0
        %v1320 = vadd.f32 %v1304, 1.0
        %v1321 = vadd.f32 %v1305, 1.0
        %v1322 = vadd.f32 %v1306, 1.0
        %v1323 = vadd.f32 %v1307, 1.0
        %v1324 = vadd.f32 %v1308, 1.0
        %v1325 = vadd.f32 %v1309, 1.0
        %v1326 = vadd.f32 %v1310, 1.0
        %v1327 = vadd.f32 %v1311, 1.0
        %v1328 = vadd.f32 %v1312, 1.0
        %v1329 = vadd.f32 %v1313, 1.0
        %v1330 = vadd.f32 %v1314, 1.0
        %v1331 = vadd.f32 %v1315, 1.0
        %v1332 = vadd.f32 %v1316, 1.0
        %v1333 = vadd.f32 %v1317, 1.0
        %v1334 = vadd.f32 %v1318, 1.0
        %v1335 = vrcp.pop %v1319
        %v1336 = vrcp.pop %v1320
        %v1337 = vrcp.pop %v1321
        %v1338 = vrcp.pop %v1322
        %v1339 = vrcp.pop %v1323
        %v1340 = vrcp.pop %v1324
        %v1341 = vrcp.pop %v1325
        %v1342 = vrcp.pop %v1326
        %v1343 = vrcp.pop %v1327
        %v1344 = vrcp.pop %v1328
        %v1345 = vrcp.pop %v1329
        %v1346 = vrcp.pop %v1330
        %v1347 = vrcp.pop %v1331
        %v1348 = vrcp.pop %v1332
        %v1349 = vrcp.pop %v1333
        %v1350 = vrcp.pop %v1334
        %v1351 = vmul.f32 %v1335, 1.0614054
        %v1352 = vmul.f32 %v1336, 1.0614054
        %v1353 = vmul.f32 %v1337, 1.0614054
        %v1354 = vmul.f32 %v1338, 1.0614054
        %v1355 = vmul.f32 %v1339, 1.0614054
        %v1356 = vmul.f32 %v1340, 1.0614054
        %v1357 = vmul.f32 %v1341, 1.0614054
        %v1358 = vmul.f32 %v1342, 1.0614054
        %v1359 = vmul.f32 %v1343, 1.0614054
        %v1360 = vmul.f32 %v1344, 1.0614054
        %v1361 = vmul.f32 %v1345, 1.0614054
        %v1362 = vmul.f32 %v1346, 1.0614054
        %v1363 = vmul.f32 %v1347, 1.0614054
        %v1364 = vmul.f32 %v1348, 1.0614054
        %v1365 = vmul.f32 %v1349, 1.0614054
        %v1366 = vmul.f32 %v1350, 1.0614054
        %v1367 = vadd.f32 %v1351, -1.4531521
        %v1368 = vadd.f32 %v1352, -1.4531521
        %v1369 = vadd.f32 %v1353, -1.4531521
        %v1370 = vadd.f32 %v1354, -1.4531521
        %v1371 = vadd.f32 %v1355, -1.4531521
        %v1372 = vadd.f32 %v1356, -1.4531521
        %v1373 = vadd.f32 %v1357, -1.4531521
        %v1374 = vadd.f32 %v1358, -1.4531521
        %v1375 = vadd.f32 %v1359, -1.4531521
        %v1376 = vadd.f32 %v1360, -1.4531521
        %v1377 = vadd.f32 %v1361, -1.4531521
        %v1378 = vadd.f32 %v1362, -1.4531521
        %v1379 = vadd.f32 %v1363, -1.4531521
        %v1380 = vadd.f32 %v1364, -1.4531521
        %v1381 = vadd.f32 %v1365, -1.4531521
        %v1382 = vadd.f32 %v1366, -1.4531521
        %v1383 = vmul.f32 %v1367, %v1335
        %v1384 = vmul.f32 %v1368, %v1336
        %v1385 = vmul.f32 %v1369, %v1337
        %v1386 = vmul.f32 %v1370, %v1338
        %v1387 = vmul.f32 %v1371, %v1339
        %v1388 = vmul.f32 %v1372, %v1340
        %v1389 = vmul.f32 %v1373, %v1341
        %v1390 = vmul.f32 %v1374, %v1342
        %v1391 = vmul.f32 %v1375, %v1343
        %v1392 = vmul.f32 %v1376, %v1344
        %v1393 = vmul.f32 %v1377, %v1345
        %v1394 = vmul.f32 %v1378, %v1346
        %v1395 = vmul.f32 %v1379, %v1347
        %v1396 = vmul.f32 %v1380, %v1348
        %v1397 = vmul.f32 %v1381, %v1349
        %v1398 = vmul.f32 %v1382, %v1350
        %v1399 = vadd.f32 %v1383, 1.4214138
        %v1400 = vadd.f32 %v1384, 1.4214138
        %v1401 = vadd.f32 %v1385, 1.4214138
        %v1402 = vadd.f32 %v1386, 1.4214138
        %v1403 = vadd.f32 %v1387, 1.4214138
        %v1404 = vadd.f32 %v1388, 1.4214138
        %v1405 = vadd.f32 %v1389, 1.4214138
        %v1406 = vadd.f32 %v1390, 1.4214138
        %v1407 = vadd.f32 %v1391, 1.4214138
        %v1408 = vadd.f32 %v1392, 1.4214138
        %v1409 = vadd.f32 %v1393, 1.4214138
        %v1410 = vadd.f32 %v1394, 1.4214138
        %v1411 = vadd.f32 %v1395, 1.4214138
        %v1412 = vadd.f32 %v1396, 1.4214138
        %v1413 = vadd.f32 %v1397, 1.4214138
        %v1414 = vadd.f32 %v1398, 1.4214138
        %v1415 = vmul.f32 %v1399, %v1335
        %v1416 = vmul.f32 %v1400, %v1336
        %v1417 = vmul.f32 %v1401, %v1337
        %v1418 = vmul.f32 %v1402, %v1338
        %v1419 = vmul.f32 %v1403, %v1339
        %v1420 = vmul.f32 %v1404, %v1340
        %v1421 = vmul.f32 %v1405, %v1341
        %v1422 = vmul.f32 %v1406, %v1342
        %v1423 = vmul.f32 %v1407, %v1343
        %v1424 = vmul.f32 %v1408, %v1344
        %v1425 = vmul.f32 %v1409, %v1345
        %v1426 = vmul.f32 %v1410, %v1346
        %v1427 = vmul.f32 %v1411, %v1347
        %v1428 = vmul.f32 %v1412, %v1348
        %v1429 = vmul.f32 %v1413, %v1349
        %v1430 = vmul.f32 %v1414, %v1350
        %v1431 = vadd.f32 %v1415, -0.28449672
        %v1432 = vadd.f32 %v1416, -0.28449672
        %v1433 = vadd.f32 %v1417, -0.28449672
        %v1434 = vadd.f32 %v1418, -0.28449672
        %v1435 = vadd.f32 %v1419, -0.28449672
        %v1436 = vadd.f32 %v1420, -0.28449672
        %v1437 = vadd.f32 %v1421, -0.28449672
        %v1438 = vadd.f32 %v1422, -0.28449672
        %v1439 = vadd.f32 %v1423, -0.28449672
        %v1440 = vadd.f32 %v1424, -0.28449672
        %v1441 = vadd.f32 %v1425, -0.28449672
        %v1442 = vadd.f32 %v1426, -0.28449672
        %v1443 = vadd.f32 %v1427, -0.28449672
        %v1444 = vadd.f32 %v1428, -0.28449672
        %v1445 = vadd.f32 %v1429, -0.28449672
        %v1446 = vadd.f32 %v1430, -0.28449672
        %v1447 = vmul.f32 %v1431, %v1335
        %v1448 = vmul.f32 %v1432, %v1336
        %v1449 = vmul.f32 %v1433, %v1337
        %v1450 = vmul.f32 %v1434, %v1338
        %v1451 = vmul.f32 %v1435, %v1339
        %v1452 = vmul.f32 %v1436, %v1340
        %v1453 = vmul.f32 %v1437, %v1341
        %v1454 = vmul.f32 %v1438, %v1342
        %v1455 = vmul.f32 %v1439, %v1343
        %v1456 = vmul.f32 %v1440, %v1344
        %v1457 = vmul.f32 %v1441, %v1345
        %v1458 = vmul.f32 %v1442, %v1346
        %v1459 = vmul.f32 %v1443, %v1347
        %v1460 = vmul.f32 %v1444, %v1348
        %v1461 = vmul.f32 %v1445, %v1349
        %v1462 = vmul.f32 %v1446, %v1350
        %v1463 = vadd.f32 %v1447, 0.2548296
        %v1464 = vadd.f32 %v1448, 0.2548296
        %v1465 = vadd.f32 %v1449, 0.2548296
        %v1466 = vadd.f32 %v1450, 0.2548296
        %v1467 = vadd.f32 %v1451, 0.2548296
        %v1468 = vadd.f32 %v1452, 0.2548296
        %v1469 = vadd.f32 %v1453, 0.2548296
        %v1470 = vadd.f32 %v1454, 0.2548296
        %v1471 = vadd.f32 %v1455, 0.2548296
        %v1472 = vadd.f32 %v1456, 0.2548296
        %v1473 = vadd.f32 %v1457, 0.2548296
        %v1474 = vadd.f32 %v1458, 0.2548296
        %v1475 = vadd.f32 %v1459, 0.2548296
        %v1476 = vadd.f32 %v1460, 0.2548296
        %v1477 = vadd.f32 %v1461, 0.2548296
        %v1478 = vadd.f32 %v1462, 0.2548296
        %v1479 = vmul.f32 %v1463, %v1335
        %v1480 = vmul.f32 %v1464, %v1336
        %v1481 = vmul.f32 %v1465, %v1337
        %v1482 = vmul.f32 %v1466, %v1338
        %v1483 = vmul.f32 %v1467, %v1339
        %v1484 = vmul.f32 %v1468, %v1340
        %v1485 = vmul.f32 %v1469, %v1341
        %v1486 = vmul.f32 %v1470, %v1342
        %v1487 = vmul.f32 %v1471, %v1343
        %v1488 = vmul.f32 %v1472, %v1344
        %v1489 = vmul.f32 %v1473, %v1345
        %v1490 = vmul.f32 %v1474, %v1346
        %v1491 = vmul.f32 %v1475, %v1347
        %v1492 = vmul.f32 %v1476, %v1348
        %v1493 = vmul.f32 %v1477, %v1349
        %v1494 = vmul.f32 %v1478, %v1350
        %v1495 = vsub.f32 0.0, %v1287
        %v1496 = vsub.f32 0.0, %v1288
        %v1497 = vsub.f32 0.0, %v1289
        %v1498 = vsub.f32 0.0, %v1290
        %v1499 = vsub.f32 0.0, %v1291
        %v1500 = vsub.f32 0.0, %v1292
        %v1501 = vsub.f32 0.0, %v1293
        %v1502 = vsub.f32 0.0, %v1294
        %v1503 = vsub.f32 0.0, %v1295
        %v1504 = vsub.f32 0.0, %v1296
        %v1505 = vsub.f32 0.0, %v1297
        %v1506 = vsub.f32 0.0, %v1298
        %v1507 = vsub.f32 0.0, %v1299
        %v1508 = vsub.f32 0.0, %v1300
        %v1509 = vsub.f32 0.0, %v1301
        %v1510 = vsub.f32 0.0, %v1302
        %v1511 = vmul.f32 %v1495, %v1287
        %v1512 = vmul.f32 %v1496, %v1288
        %v1513 = vmul.f32 %v1497, %v1289
        %v1514 = vmul.f32 %v1498, %v1290
        %v1515 = vmul.f32 %v1499, %v1291
        %v1516 = vmul.f32 %v1500, %v1292
        %v1517 = vmul.f32 %v1501, %v1293
        %v1518 = vmul.f32 %v1502, %v1294
        %v1519 = vmul.f32 %v1503, %v1295
        %v1520 = vmul.f32 %v1504, %v1296
        %v1521 = vmul.f32 %v1505, %v1297
        %v1522 = vmul.f32 %v1506, %v1298
        %v1523 = vmul.f32 %v1507, %v1299
        %v1524 = vmul.f32 %v1508, %v1300
        %v1525 = vmul.f32 %v1509, %v1301
        %v1526 = vmul.f32 %v1510, %v1302
        %v1527 = vmul.f32 %v1511, 1.442695
        %v1528 = vpow.pop %v1527
        %v1529 = vmul.f32 %v1512, 1.442695
        %v1530 = vpow.pop %v1529
        %v1531 = vmul.f32 %v1513, 1.442695
        %v1532 = vpow.pop %v1531
        %v1533 = vmul.f32 %v1514, 1.442695
        %v1534 = vpow.pop %v1533
        %v1535 = vmul.f32 %v1515, 1.442695
        %v1536 = vpow.pop %v1535
        %v1537 = vmul.f32 %v1516, 1.442695
        %v1538 = vpow.pop %v1537
        %v1539 = vmul.f32 %v1517, 1.442695
        %v1540 = vpow.pop %v1539
        %v1541 = vmul.f32 %v1518, 1.442695
        %v1542 = vpow.pop %v1541
        %v1543 = vmul.f32 %v1519, 1.442695
        %v1544 = vpow.pop %v1543
        %v1545 = vmul.f32 %v1520, 1.442695
        %v1546 = vpow.pop %v1545
        %v1547 = vmul.f32 %v1521, 1.442695
        %v1548 = vpow.pop %v1547
        %v1549 = vmul.f32 %v1522, 1.442695
        %v1550 = vpow.pop %v1549
        %v1551 = vmul.f32 %v1523, 1.442695
        %v1552 = vpow.pop %v1551
        %v1553 = vmul.f32 %v1524, 1.442695
        %v1554 = vpow.pop %v1553
        %v1555 = vmul.f32 %v1525, 1.442695
        %v1556 = vpow.pop %v1555
        %v1557 = vmul.f32 %v1526, 1.442695
        %v1558 = vpow.pop %v1557
        %v1559 = vmul.f32 %v1479, %v1528
        %v1560 = vmul.f32 %v1480, %v1530
        %v1561 = vmul.f32 %v1481, %v1532
        %v1562 = vmul.f32 %v1482, %v1534
        %v1563 = vmul.f32 %v1483, %v1536
        %v1564 = vmul.f32 %v1484, %v1538
        %v1565 = vmul.f32 %v1485, %v1540
        %v1566 = vmul.f32 %v1486, %v1542
        %v1567 = vmul.f32 %v1487, %v1544
        %v1568 = vmul.f32 %v1488, %v1546
        %v1569 = vmul.f32 %v1489, %v1548
        %v1570 = vmul.f32 %v1490, %v1550
        %v1571 = vmul.f32 %v1491, %v1552
        %v1572 = vmul.f32 %v1492, %v1554
        %v1573 = vmul.f32 %v1493, %v1556
        %v1574 = vmul.f32 %v1494, %v1558
        %v1575 = vsub.f32 1.0, %v1559
        %v1576 = vsub.f32 1.0, %v1560
        %v1577 = vsub.f32 1.0, %v1561
        %v1578 = vsub.f32 1.0, %v1562
        %v1579 = vsub.f32 1.0, %v1563
        %v1580 = vsub.f32 1.0, %v1564
        %v1581 = vsub.f32 1.0, %v1565
        %v1582 = vsub.f32 1.0, %v1566
        %v1583 = vsub.f32 1.0, %v1567
        %v1584 = vsub.f32 1.0, %v1568
        %v1585 = vsub.f32 1.0, %v1569
        %v1586 = vsub.f32 1.0, %v1570
        %v1587 = vsub.f32 1.0, %v1571
        %v1588 = vsub.f32 1.0, %v1572
        %v1589 = vsub.f32 1.0, %v1573
        %v1590 = vsub.f32 1.0, %v1574
        %vm1591 = vcmp.ge.f32.partialorder %v1271, 0.0
        %vm1592 = vcmp.ge.f32.partialorder %v1272, 0.0
        %vm1593 = vcmp.ge.f32.partialorder %v1273, 0.0
        %vm1594 = vcmp.ge.f32.partialorder %v1274, 0.0
        %vm1595 = vcmp.ge.f32.partialorder %v1275, 0.0
        %vm1596 = vcmp.ge.f32.partialorder %v1276, 0.0
        %vm1597 = vcmp.ge.f32.partialorder %v1277, 0.0
        %vm1598 = vcmp.ge.f32.partialorder %v1278, 0.0
        %vm1599 = vcmp.ge.f32.partialorder %v1279, 0.0
        %vm1600 = vcmp.ge.f32.partialorder %v1280, 0.0
        %vm1601 = vcmp.ge.f32.partialorder %v1281, 0.0
        %vm1602 = vcmp.ge.f32.partialorder %v1282, 0.0
        %vm1603 = vcmp.ge.f32.partialorder %v1283, 0.0
        %vm1604 = vcmp.ge.f32.partialorder %v1284, 0.0
        %vm1605 = vcmp.ge.f32.partialorder %v1285, 0.0
        %vm1606 = vcmp.ge.f32.partialorder %v1286, 0.0
        %v1607 = vsub.f32 0.0, %v1575
        %v1608 = vsub.f32 0.0, %v1576
        %v1609 = vsub.f32 0.0, %v1577
        %v1610 = vsub.f32 0.0, %v1578
        %v1611 = vsub.f32 0.0, %v1579
        %v1612 = vsub.f32 0.0, %v1580
        %v1613 = vsub.f32 0.0, %v1581
        %v1614 = vsub.f32 0.0, %v1582
        %v1615 = vsub.f32 0.0, %v1583
        %v1616 = vsub.f32 0.0, %v1584
        %v1617 = vsub.f32 0.0, %v1585
        %v1618 = vsub.f32 0.0, %v1586
        %v1619 = vsub.f32 0.0, %v1587
        %v1620 = vsub.f32 0.0, %v1588
        %v1621 = vsub.f32 0.0, %v1589
        %v1622 = vsub.f32 0.0, %v1590
        %v1623 = vsel %vm1591, %v1575, %v1607
        %v1624 = vsel %vm1592, %v1576, %v1608
        %v1625 = vsel %vm1593, %v1577, %v1609
        %v1626 = vsel %vm1594, %v1578, %v1610
        %v1627 = vsel %vm1595, %v1579, %v1611
        %v1628 = vsel %vm1596, %v1580, %v1612
        %v1629 = vsel %vm1597, %v1581, %v1613
        %v1630 = vsel %vm1598, %v1582, %v1614
        %v1631 = vsel %vm1599, %v1583, %v1615
        %v1632 = vsel %vm1600, %v1584, %v1616
        %v1633 = vsel %vm1601, %v1585, %v1617
        %v1634 = vsel %vm1602, %v1586, %v1618
        %v1635 = vsel %vm1603, %v1587, %v1619
        %v1636 = vsel %vm1604, %v1588, %v1620
        %v1637 = vsel %vm1605, %v1589, %v1621
        %v1638 = vsel %vm1606, %v1590, %v1622
        %v1639 = vmul.f32 %v1233, 0.5
        %v1640 = vmul.f32 %v1235, 0.5
        %v1641 = vmul.f32 %v1237, 0.5
        %v1642 = vmul.f32 %v1239, 0.5
        %v1643 = vmul.f32 %v1243, 0.5
        %v1644 = vmul.f32 %v1245, 0.5
        %v1645 = vmul.f32 %v1247, 0.5
        %v1646 = vmul.f32 %v1249, 0.5
        %v1647 = vmul.f32 %v1253, 0.5
        %v1648 = vmul.f32 %v1255, 0.5
        %v1649 = vmul.f32 %v1257, 0.5
        %v1650 = vmul.f32 %v1259, 0.5
        %v1651 = vmul.f32 %v1263, 0.5
        %v1652 = vmul.f32 %v1265, 0.5
        %v1653 = vmul.f32 %v1267, 0.5
        %v1654 = vmul.f32 %v1269, 0.5
        %v1655 = vadd.f32 %v1623, 1.0
        %v1656 = vadd.f32 %v1624, 1.0
        %v1657 = vadd.f32 %v1625, 1.0
        %v1658 = vadd.f32 %v1626, 1.0
        %v1659 = vadd.f32 %v1627, 1.0
        %v1660 = vadd.f32 %v1628, 1.0
        %v1661 = vadd.f32 %v1629, 1.0
        %v1662 = vadd.f32 %v1630, 1.0
        %v1663 = vadd.f32 %v1631, 1.0
        %v1664 = vadd.f32 %v1632, 1.0
        %v1665 = vadd.f32 %v1633, 1.0
        %v1666 = vadd.f32 %v1634, 1.0
        %v1667 = vadd.f32 %v1635, 1.0
        %v1668 = vadd.f32 %v1636, 1.0
        %v1669 = vadd.f32 %v1637, 1.0
        %v1670 = vadd.f32 %v1638, 1.0
        %v1671 = vmul.f32 %v1639, %v1655
        %v1672 = vmul.f32 %v1640, %v1656
        %v1673 = vmul.f32 %v1641, %v1657
        %v1674 = vmul.f32 %v1642, %v1658
        %v1675 = vmul.f32 %v1643, %v1659
        %v1676 = vmul.f32 %v1644, %v1660
        %v1677 = vmul.f32 %v1645, %v1661
        %v1678 = vmul.f32 %v1646, %v1662
        %v1679 = vmul.f32 %v1647, %v1663
        %v1680 = vmul.f32 %v1648, %v1664
        %v1681 = vmul.f32 %v1649, %v1665
        %v1682 = vmul.f32 %v1650, %v1666
        %v1683 = vmul.f32 %v1651, %v1667
        %v1684 = vmul.f32 %v1652, %v1668
        %v1685 = vmul.f32 %v1653, %v1669
        %v1686 = vmul.f32 %v1654, %v1670
        %p1687 = scmp.eq.s32.totalorder %s44, 0
        // Predicated region
        $region125: #{tpu_custom_call.1} parent=71 // pred_check
          %p1688 = pneg %p1687
        $region126: #{tpu_custom_call.1} parent=71 // pred_check_branch
          %1690 = sbr.rel (%p1688) target = $region128
        $region127: #{tpu_custom_call.1} parent=71 // pred_region
          %p1691 = scmp.eq.s32.totalorder %s45, 0
          // Predicated region
          $region129: #{tpu_custom_call.1} parent=127 // pred_check
            %p1692 = pneg %p1691
          $region130: #{tpu_custom_call.1} parent=127 // pred_check_branch
            %1694 = sbr.rel (%p1692) target = $region132
          $region131: #{tpu_custom_call.1} parent=127 // pred_region
            %v1695 = vlaneseq
            %vm1696 = vcmp.ge.s32.totalorder %v1695, 0
            %vm1697 = vcmp.lt.s32.totalorder %v1695, 256
            %vm1698 = vmand %vm1696, %vm1697
            %1699 = vst.msk [vmem:[#allocation2] sm:$0x3] %vm1698, 0.0
          $region132: #{tpu_custom_call.1} parent=127 // pred_fallthru
            _
          %v1700 = vld [vmem:[#allocation2] sm:$0x3]
          %v1701 = vmul.f32 %v1671, %v1671
          %v1702 = vmul.f32 %v1672, %v1672
          %v1703 = vmul.f32 %v1673, %v1673
          %v1704 = vmul.f32 %v1674, %v1674
          %v1705 = vmul.f32 %v1675, %v1675
          %v1706 = vmul.f32 %v1676, %v1676
          %v1707 = vmul.f32 %v1677, %v1677
          %v1708 = vmul.f32 %v1678, %v1678
          %v1709 = vmul.f32 %v1679, %v1679
          %v1710 = vmul.f32 %v1680, %v1680
          %v1711 = vmul.f32 %v1681, %v1681
          %v1712 = vmul.f32 %v1682, %v1682
          %v1713 = vmul.f32 %v1683, %v1683
          %v1714 = vmul.f32 %v1684, %v1684
          %v1715 = vmul.f32 %v1685, %v1685
          %v1716 = vmul.f32 %v1686, %v1686
          %v1717 = vadd.f32 %v1701, %v1703
          %v1718 = vadd.f32 %v1717, %v1705
          %v1719 = vadd.f32 %v1718, %v1707
          %v1720 = vadd.f32 %v1719, %v1709
          %v1721 = vadd.f32 %v1720, %v1711
          %v1722 = vadd.f32 %v1721, %v1713
          %v1723 = vadd.f32 %v1722, %v1715
          %v1724 = vrot.slane %v1723, 4
          %v1725 = vadd.f32 %v1723, %v1724
          %v1726 = vrot.slane %v1725, 2
          %v1727 = vadd.f32 %v1725, %v1726
          %v1728 = vrot.slane %v1727, 1
          %v1729 = vadd.f32 %v1727, %v1728
          %v1730 = vadd.f32 %v1702, %v1704
          %v1731 = vadd.f32 %v1730, %v1706
          %v1732 = vadd.f32 %v1731, %v1708
          %v1733 = vadd.f32 %v1732, %v1710
          %v1734 = vadd.f32 %v1733, %v1712
          %v1735 = vadd.f32 %v1734, %v1714
          %v1736 = vadd.f32 %v1735, %v1716
          %v1737 = vrot.slane %v1736, 4
          %v1738 = vadd.f32 %v1736, %v1737
          %v1739 = vrot.slane %v1738, 2
          %v1740 = vadd.f32 %v1738, %v1739
          %v1741 = vrot.slane %v1740, 1
          %v1742 = vadd.f32 %v1740, %v1741
          %v1745 = vcombine.low %v1729, %v1742
          %v1747 = vunpack.c.l.s4 1966171168
          %v1748 = vunpack.c.0.s8 %v1747
          %v1749 = vlaneseq
          %v1750 = vshrl.u32 %v1749, 7
          %v1751 = vsub.s32 %v1748, %v1750
          %v1752 = vrot.slane %v1745, %v1751
          %v1754 = vunpack.c.l.s4 1966171168
          %v1755 = vunpack.c.0.s8 %v1754
          %v1756 = vlaneseq
          %v1757 = vshrl.u32 %v1756, 7
          %v1758 = vsub.s32 %v1755, %v1757
          %v1759 = vrot.slane %v1752, %v1758
          %v1761 = vadd.f32 %v1700, %v1759
          %v1762 = vlaneseq
          %vm1763 = vcmp.ge.s32.totalorder %v1762, 0
          %vm1764 = vcmp.lt.s32.totalorder %v1762, 256
          %vm1765 = vmand %vm1763, %vm1764
          %1766 = vst.msk [vmem:[#allocation2] sm:$0x3] %vm1765, %v1761
        $region128: #{tpu_custom_call.1} parent=71 // pred_fallthru
          _
        %p1767 = scmp.eq.s32.totalorder %s44, 1
        // Predicated region
        $region133: #{tpu_custom_call.1} parent=71 // pred_check
          %p1768 = pneg %p1767
        $region134: #{tpu_custom_call.1} parent=71 // pred_check_branch
          %1770 = sbr.rel (%p1768) target = $region136
        $region135: #{tpu_custom_call.1} parent=71 // pred_region
          %v1771 = vld [vmem:[#allocation2] sm:$0x3]
          %v1772 = vrsqrt.pop %v1771
          %v1773 = vmul.f32 %v1771, %v1772
          %vm1774 = vcmp.eq.f32.partialorder %v1771, inf
          %v1775 = vsel %vm1774, %v1771, %v1773
          %vm1776 = vcmp.eq.f32.partialorder %v1771, 0.0
          %v1777 = vand.u32 %v1771, 2147483648
          %v1778 = vsel %vm1776, %v1777, %v1775
          %v1780 = vlaneseq
          %v1781 = vshrl.u32 %v1780, 7
          %v1782 = vsub.s32 0, %v1781
          %v1783 = vrot.slane %v1778, %v1782
          %v1784 = vlaneseq
          %v1785 = vshrl.u32 %v1784, 7
          %v1786 = vsub.s32 1, %v1785
          %v1787 = vrot.slane %v1778, %v1786
          %vm1790 = vcmask 1040384
          %v1791 = vsel %vm1790, %v1783, 0.0
          %v1792 = vsel %vm1790, %v1787, 0.0
          %v1793 = vadd.f32 %v1791, %v1792
          %1794 = vadd.xlane.f32.xlu0 %v1793
          %v1795 = vpop.xlane.xlu0 %1794
          %v1796 = vrcp.pop 256.0
          %v1797 = vmul.f32 %v1795, %v1796
          %v1798 = vadd.f32 %v1797, 1e-06
          %v1800 = vlaneseq
          %v1801 = vshrl.u32 %v1800, 7
          %v1802 = vsub.s32 0, %v1801
          %v1803 = vrot.slane %v1798, %v1802
          %v1805 = vrcp.pop %v1803
          %v1806 = vmul.f32 %v1778, %v1805
          %v1807 = vld [vmem:[#allocation19] sm:$0x3]
          %v1808 = vmul.f32 %v1807, %v1806
          %v1809 = vadd.f32 %v1808, 1.0
          %v1811 = vlaneseq
          %v1812 = vshrl.u32 %v1811, 7
          %v1813 = vsub.s32 0, %v1812
          %v1814 = vrot.slane %v1809, %v1813
          %v1815 = vlaneseq
          %v1816 = vshrl.u32 %v1815, 7
          %v1817 = vsub.s32 1, %v1816
          %v1818 = vrot.slane %v1809, %v1817
          %v1821 = vmul.f32 %v1671, %v1814
          %v1822 = vmul.f32 %v1672, %v1818
          %v1823 = vmul.f32 %v1673, %v1814
          %v1824 = vmul.f32 %v1674, %v1818
          %v1825 = vmul.f32 %v1675, %v1814
          %v1826 = vmul.f32 %v1676, %v1818
          %v1827 = vmul.f32 %v1677, %v1814
          %v1828 = vmul.f32 %v1678, %v1818
          %v1829 = vmul.f32 %v1679, %v1814
          %v1830 = vmul.f32 %v1680, %v1818
          %v1831 = vmul.f32 %v1681, %v1814
          %v1832 = vmul.f32 %v1682, %v1818
          %v1833 = vmul.f32 %v1683, %v1814
          %v1834 = vmul.f32 %v1684, %v1818
          %v1835 = vmul.f32 %v1685, %v1814
          %v1836 = vmul.f32 %v1686, %v1818
          %v1837 = vld [vmem:[#allocation21] sm:$0x3]
          %v1839 = vlaneseq
          %v1840 = vshrl.u32 %v1839, 7
          %v1841 = vsub.s32 0, %v1840
          %v1842 = vrot.slane %v1837, %v1841
          %v1843 = vlaneseq
          %v1844 = vshrl.u32 %v1843, 7
          %v1845 = vsub.s32 1, %v1844
          %v1846 = vrot.slane %v1837, %v1845
          %v1849 = vadd.f32 %v1821, %v1842
          %v1850 = vadd.f32 %v1822, %v1846
          %v1851 = vadd.f32 %v1823, %v1842
          %v1852 = vadd.f32 %v1824, %v1846
          %v1853 = vadd.f32 %v1825, %v1842
          %v1854 = vadd.f32 %v1826, %v1846
          %v1855 = vadd.f32 %v1827, %v1842
          %v1856 = vadd.f32 %v1828, %v1846
          %v1857 = vadd.f32 %v1829, %v1842
          %v1858 = vadd.f32 %v1830, %v1846
          %v1859 = vadd.f32 %v1831, %v1842
          %v1860 = vadd.f32 %v1832, %v1846
          %v1861 = vadd.f32 %v1833, %v1842
          %v1862 = vadd.f32 %v1834, %v1846
          %v1863 = vadd.f32 %v1835, %v1842
          %v1864 = vadd.f32 %v1836, %v1846
          %v1865 = vpack.c.bf16 %v1851, %v1849
          %v1866 = vpack.c.bf16 %v1852, %v1850
          %v1867 = vpack.c.bf16 %v1855, %v1853
          %v1868 = vpack.c.bf16 %v1856, %v1854
          %v1869 = vpack.c.bf16 %v1859, %v1857
          %v1870 = vpack.c.bf16 %v1860, %v1858
          %v1871 = vpack.c.bf16 %v1863, %v1861
          %v1872 = vpack.c.bf16 %v1864, %v1862
          %v1873 = vld [vmem:[#allocation22] sm:$0xf]
          %v1874 = vld [vmem:[#allocation22 + $0x4] sm:$0xf]
          %v1875 = vld [vmem:[#allocation22 + $0x8] sm:$0xf]
          %v1876 = vld [vmem:[#allocation22 + $0xc] sm:$0xf]
          %v1877 = vld [vmem:[#allocation22 + $0x10] sm:$0xf]
          %v1878 = vld [vmem:[#allocation22 + $0x14] sm:$0xf]
          %v1879 = vld [vmem:[#allocation22 + $0x18] sm:$0xf]
          %v1880 = vld [vmem:[#allocation22 + $0x1c] sm:$0xf]
          %v1881 = vld [vmem:[#allocation22 + $0x20] sm:$0xf]
          %v1882 = vld [vmem:[#allocation22 + $0x24] sm:$0xf]
          %v1883 = vld [vmem:[#allocation22 + $0x28] sm:$0xf]
          %v1884 = vld [vmem:[#allocation22 + $0x2c] sm:$0xf]
          %v1885 = vld [vmem:[#allocation22 + $0x30] sm:$0xf]
          %v1886 = vld [vmem:[#allocation22 + $0x34] sm:$0xf]
          %v1887 = vld [vmem:[#allocation22 + $0x38] sm:$0xf]
          %v1888 = vld [vmem:[#allocation22 + $0x3c] sm:$0xf]
          %v1889 = vld [vmem:[#allocation22 + $0x40] sm:$0xf]
          %v1890 = vld [vmem:[#allocation22 + $0x44] sm:$0xf]
          %v1891 = vld [vmem:[#allocation22 + $0x48] sm:$0xf]
          %v1892 = vld [vmem:[#allocation22 + $0x4c] sm:$0xf]
          %v1893 = vld [vmem:[#allocation22 + $0x50] sm:$0xf]
          %v1894 = vld [vmem:[#allocation22 + $0x54] sm:$0xf]
          %v1895 = vld [vmem:[#allocation22 + $0x58] sm:$0xf]
          %v1896 = vld [vmem:[#allocation22 + $0x5c] sm:$0xf]
          %v1897 = vld [vmem:[#allocation22 + $0x60] sm:$0xf]
          %v1898 = vld [vmem:[#allocation22 + $0x64] sm:$0xf]
          %v1899 = vld [vmem:[#allocation22 + $0x68] sm:$0xf]
          %v1900 = vld [vmem:[#allocation22 + $0x6c] sm:$0xf]
          %v1901 = vld [vmem:[#allocation22 + $0x70] sm:$0xf]
          %v1902 = vld [vmem:[#allocation22 + $0x74] sm:$0xf]
          %v1903 = vld [vmem:[#allocation22 + $0x78] sm:$0xf]
          %v1904 = vld [vmem:[#allocation22 + $0x7c] sm:$0xf]
          %v1905 = vld [vmem:[#allocation24] sm:$0x1]
          %v1907 = vlaneseq
          %v1908 = vshrl.u32 %v1907, 7
          %v1909 = vsub.s32 0, %v1908
          %v1910 = vrot.slane %v1905, %v1909
          %v1944 = vunpack.c.l.b16 %v1873
          %v1945 = vunpack.c.l.b16 %v1874
          %v1946 = vunpack.c.l.b16 %v1875
          %v1947 = vunpack.c.l.b16 %v1876
          %v1948 = vunpack.c.l.b16 %v1877
          %v1949 = vunpack.c.l.b16 %v1878
          %v1950 = vunpack.c.l.b16 %v1879
          %v1951 = vunpack.c.l.b16 %v1880
          %v1952 = vunpack.c.l.b16 %v1881
          %v1953 = vunpack.c.l.b16 %v1882
          %v1954 = vunpack.c.l.b16 %v1883
          %v1955 = vunpack.c.l.b16 %v1884
          %v1956 = vunpack.c.l.b16 %v1885
          %v1957 = vunpack.c.l.b16 %v1886
          %v1958 = vunpack.c.l.b16 %v1887
          %v1959 = vunpack.c.l.b16 %v1888
          %v1960 = vunpack.c.l.b16 %v1889
          %v1961 = vunpack.c.l.b16 %v1890
          %v1962 = vunpack.c.l.b16 %v1891
          %v1963 = vunpack.c.l.b16 %v1892
          %v1964 = vunpack.c.l.b16 %v1893
          %v1965 = vunpack.c.l.b16 %v1894
          %v1966 = vunpack.c.l.b16 %v1895
          %v1967 = vunpack.c.l.b16 %v1896
          %v1968 = vunpack.c.l.b16 %v1897
          %v1969 = vunpack.c.l.b16 %v1898
          %v1970 = vunpack.c.l.b16 %v1899
          %v1971 = vunpack.c.l.b16 %v1900
          %v1972 = vunpack.c.l.b16 %v1901
          %v1973 = vunpack.c.l.b16 %v1902
          %v1974 = vunpack.c.l.b16 %v1903
          %v1975 = vunpack.c.l.b16 %v1904
          %v1976 = vpack.c.b16 %v1945, %v1944
          %v1977 = vpack.c.b16 %v1947, %v1946
          %v1978 = vpack.c.b16 %v1949, %v1948
          %v1979 = vpack.c.b16 %v1951, %v1950
          %v1980 = vpack.c.b16 %v1953, %v1952
          %v1981 = vpack.c.b16 %v1955, %v1954
          %v1982 = vpack.c.b16 %v1957, %v1956
          %v1983 = vpack.c.b16 %v1959, %v1958
          %v1984 = vpack.c.b16 %v1961, %v1960
          %v1985 = vpack.c.b16 %v1963, %v1962
          %v1986 = vpack.c.b16 %v1965, %v1964
          %v1987 = vpack.c.b16 %v1967, %v1966
          %v1988 = vpack.c.b16 %v1969, %v1968
          %v1989 = vpack.c.b16 %v1971, %v1970
          %v1990 = vpack.c.b16 %v1973, %v1972
          %v1991 = vpack.c.b16 %v1975, %v1974
          %2008 = vmatprep.subr.bf16.mxu0 0
          %2009 = vmatpush1.bf16.msra.mxu0 %v1976
          %2010 = vmatprep.subr.bf16.mxu0 0
          %2011 = vmatpush1.bf16.msra.mxu0 %v1977
          %2012 = vmatprep.subr.bf16.mxu0 0
          %2013 = vmatpush1.bf16.msra.mxu0 %v1978
          %2014 = vmatprep.subr.bf16.mxu0 0
          %2015 = vmatpush1.bf16.msra.mxu0 %v1979
          %2016 = vmatprep.subr.bf16.mxu0 0
          %2017 = vmatpush1.bf16.msra.mxu0 %v1980
          %2018 = vmatprep.subr.bf16.mxu0 0
          %2019 = vmatpush1.bf16.msra.mxu0 %v1981
          %2020 = vmatprep.subr.bf16.mxu0 0
          %2021 = vmatpush1.bf16.msra.mxu0 %v1982
          %2022 = vmatprep.subr.bf16.mxu0 0
          %2023 = vmatpush1.bf16.msra.mxu0 %v1983
          %2024 = vmatprep.subr.bf16.mxu0 0
          %2025 = vmatpush1.bf16.msra.mxu0 %v1984
          %2026 = vmatprep.subr.bf16.mxu0 0
          %2027 = vmatpush1.bf16.msra.mxu0 %v1985
          %2028 = vmatprep.subr.bf16.mxu0 0
          %2029 = vmatpush1.bf16.msra.mxu0 %v1986
          %2030 = vmatprep.subr.bf16.mxu0 0
          %2031 = vmatpush1.bf16.msra.mxu0 %v1987
          %2032 = vmatprep.subr.bf16.mxu0 0
          %2033 = vmatpush1.bf16.msra.mxu0 %v1988
          %2034 = vmatprep.subr.bf16.mxu0 0
          %2035 = vmatpush1.bf16.msra.mxu0 %v1989
          %2036 = vmatprep.subr.bf16.mxu0 0
          %2037 = vmatpush1.bf16.msra.mxu0 %v1990
          %2038 = vmatprep.subr.bf16.mxu0 0
          %2039 = vmatpush1.bf16.msra.mxu0 %v1991
          %2040 = vmatprep.mubr.bf16.mxu0 %v1866
          %2041 = vmatmul.mubr.bf16.gmra.mrb[0].mxu0 %v1865
          %v2042 = vpop.f32.mrb[0].mxu0
          %v2043 = vadd.f32 %v1910, %v2042
          %v2044 = vpop.f32.mrb[0].mxu0
          %v2045 = vpop.f32.mrb[0].mxu0
          %v2046 = vadd.f32 %v1910, %v2045
          %v2047 = vpop.f32.mrb[0].mxu0
          %2048 = vmatprep.mubr.bf16.mxu0 %v1868
          %2049 = vmatmul.mubr.bf16.gmra.mrb[0].mxu0 %v1867
          %v2050 = vpop.f32.mrb[0].mxu0
          %v2051 = vadd.f32 %v1910, %v2050
          %v2052 = vpop.f32.mrb[0].mxu0
          %v2053 = vpop.f32.mrb[0].mxu0
          %v2054 = vadd.f32 %v1910, %v2053
          %v2055 = vpop.f32.mrb[0].mxu0
          %2056 = vmatprep.mubr.bf16.mxu0 %v1870
          %2057 = vmatmul.mubr.bf16.gmra.mrb[0].mxu0 %v1869
          %v2058 = vpop.f32.mrb[0].mxu0
          %v2059 = vadd.f32 %v1910, %v2058
          %v2060 = vpop.f32.mrb[0].mxu0
          %v2061 = vpop.f32.mrb[0].mxu0
          %v2062 = vadd.f32 %v1910, %v2061
          %v2063 = vpop.f32.mrb[0].mxu0
          %2064 = vmatprep.mubr.bf16.mxu0 %v1872
          %2065 = vmatmul.mubr.bf16.gmra.mrb[0].mxu0 %v1871
          %v2066 = vpop.f32.mrb[0].mxu0
          %v2067 = vadd.f32 %v1910, %v2066
          %v2068 = vpop.f32.mrb[0].mxu0
          %v2069 = vpop.f32.mrb[0].mxu0
          %v2070 = vadd.f32 %v1910, %v2069
          %v2071 = vpop.f32.mrb[0].mxu0
          %2072 = vdwg.mxu0
          %v2073 = vld [vmem:[%s609] sm:$0xff]
          %v2074 = vld [vmem:[%s609 + $0x8] sm:$0xff]
          %v2075 = vld [vmem:[%s609 + $0x10] sm:$0xff]
          %v2076 = vld [vmem:[%s609 + $0x18] sm:$0xff]
          %v2077 = vld [vmem:[%s609 + $0x20] sm:$0xff]
          %v2078 = vld [vmem:[%s609 + $0x28] sm:$0xff]
          %v2079 = vld [vmem:[%s609 + $0x30] sm:$0xff]
          %v2080 = vld [vmem:[%s609 + $0x38] sm:$0xff]
          %v2081 = vadd.f32 %v2073, %v2043
          %v2082 = vadd.f32 %v2074, %v2046
          %v2083 = vadd.f32 %v2075, %v2051
          %v2084 = vadd.f32 %v2076, %v2054
          %v2085 = vadd.f32 %v2077, %v2059
          %v2086 = vadd.f32 %v2078, %v2062
          %v2087 = vadd.f32 %v2079, %v2067
          %v2088 = vadd.f32 %v2080, %v2070
          %2089 = vst [vmem:[%s719] sm:$0xff] %v2081
          %2090 = vst [vmem:[%s719 + $0x8] sm:$0xff] %v2082
          %2091 = vst [vmem:[%s719 + $0x10] sm:$0xff] %v2083
          %2092 = vst [vmem:[%s719 + $0x18] sm:$0xff] %v2084
          %2093 = vst [vmem:[%s719 + $0x20] sm:$0xff] %v2085
          %2094 = vst [vmem:[%s719 + $0x28] sm:$0xff] %v2086
          %2095 = vst [vmem:[%s719 + $0x30] sm:$0xff] %v2087
          %2096 = vst [vmem:[%s719 + $0x38] sm:$0xff] %v2088
        $region136: #{tpu_custom_call.1} parent=71 // pred_fallthru
          _
        %s2097 = sand.u32 %s377, 1
        %s2098 = scalar_lea.sflag [#allocation6], %s2097
        %s2099 = sand.u32 %s377, 1
        %s2100 = smul.addr %s2099, 64
        %s2101 = scalar_lea.vmem [#allocation25], %s2100
        // Predicated region
        $region137: #{tpu_custom_call.1} parent=71 // pred_check
          %p2102 = pneg %p387
        $region138: #{tpu_custom_call.1} parent=71 // pred_check_branch
          %2104 = sbr.rel (%p2102) target = $region140
        $region139: #{tpu_custom_call.1} parent=71 // pred_region
          %p2105 = scmp.eq.s32.totalorder %s44, 1
          %s2106 = scalar_select %p2105, %s45, 0
          %s2107 = smul.u32 8, %s2106
          %s2109 = ssub.s32 1024, 1024
          %2110 = vsyncadd %s2098, %s2109
          %s2111 = smul.addr %s43, 32
          %s2112 = sadd.s32 %s2107, %s2111
          %s2113 = smul.addr %s2112, 128
          %s2114 = scalar_lea.hbm %s13, %s2113
          %s2115 = sshll.u32 %s2101, 4
          %s2116 = int_to_ptr.vmem [resolvable:$true] %s2115
          %2121 = dma.vmem_to_hbm [thread:$0]  %s2116, 1024, %s2114, %s2098, 128, 128, 8
        $region140: #{tpu_custom_call.1} parent=71 // pred_fallthru
          _
      $region72: #{tpu_custom_call.1} parent=5 // pred_fallthru
        _
      %p2122 = scmp.le.s32.totalorder 2, %s33
      // Predicated region
      $region141: #{tpu_custom_call.1} parent=5 // pred_check
        %p2123 = pneg %p2122
      $region142: #{tpu_custom_call.1} parent=5 // pred_check_branch
        %2125 = sbr.rel (%p2123) target = $region144
      $region143: #{tpu_custom_call.1} parent=5 // pred_region
        %s2126 = ssub.s32 %s33, 2
        // Predicated region
        $region145: #{tpu_custom_call.1} parent=143 // pred_check
          %p2127 = pneg %p393
        $region146: #{tpu_custom_call.1} parent=143 // pred_check_branch
          %2129 = sbr.rel (%p2127) target = $region148
        $region147: #{tpu_custom_call.1} parent=143 // pred_region
          %s2130 = sand.u32 %s378, 1
          %s2131 = scalar_lea.sflag [#allocation6], %s2130
          %s2132 = sand.u32 %s378, 1
          %s2133 = smul.addr %s2132, 64
          %s2134 = scalar_lea.vmem [#allocation25], %s2133
          %2135 = dma.done %s2131, 1024
        $region148: #{tpu_custom_call.1} parent=143 // pred_fallthru
          _
      $region144: #{tpu_custom_call.1} parent=5 // pred_fallthru
        _
    $region6: #{tpu_custom_call.1} parent=1 // loop_footer
      %s37 = sadd.s32 1, %s33
    $region7: #{tpu_custom_call.1} parent=1 // loop_footer_branch
      %32 = sbr.rel target = $region3
    $region8: #{tpu_custom_call.1} parent=1 // loop_exit
      _
    %2136 = vsyncpa [#allocation5], 1
    %s2137 = scalar_lea.sflag [#allocation5], 1
    %2138 = vsyncpa %s2137, 1
    %2139 = vsyncpa [#allocation8], 1
    %s2140 = scalar_lea.sflag [#allocation8], 1
    %2141 = vsyncpa %s2140, 1
    %2142 = vsyncpa [#allocation11], 1
    %2143 = vsyncpa [#allocation14], 1
    %2144 = vsyncpa [#allocation17], 1
    %2145 = vsyncpa [#allocation20], 1
    %2146 = vsyncpa [#allocation23], 1
    %2147 = vsyncpa [#allocation6], 1
    %s2148 = scalar_lea.sflag [#allocation6], 1
    %2149 = vsyncpa %s2148, 1

</llo_original>
